<compile_context>
chip_gen: v6e
topology: v6e:2x2x1
jax: 0.10.0
libtpu: 0.0.40
codegen_flags: <defaults>
</compile_context>

<pallas_src>
import jax
import jax.numpy as jnp
from jax import lax
from jax.experimental import pallas as pl
from jax.experimental.pallas import tpu as pltpu


# ----------------------------------------------------------------------------
# helpers
# ----------------------------------------------------------------------------
def _safe_div(num, den):
    # torch: `if divisor == 0: return 0` -> branch-free
    den_ok = den != 0.0
    return jnp.where(den_ok, num / jnp.where(den_ok, den, 1.0), 0.0)


def _round_up(x, m):
    return -(-x // m) * m


def _choose_block_rows(H, W, align, max_bytes=2 << 20):
    """Largest H-chunk that divides H, is `align`-aligned and uses ~<=max_bytes
    of VMEM per input block (lane dim padded to 128)."""
    w_pad = _round_up(W, 128)
    max_rows = max(align, max_bytes // (4 * w_pad))
    best = None
    th = align
    while th <= H:
        if H % th == 0 and th <= max_rows:
            best = th
        th += align
    return best if best is not None else H


# ----------------------------------------------------------------------------
# Fused whole-image kernel (used when one image fits the VMEM budget):
# reads p/t/m once, computes sums, 2x2 solve, MSE and all gradient sums.
# ----------------------------------------------------------------------------
def _make_whole_image_kernel(steps):
    S = len(steps)

    def kernel(p_ref, t_ref, m_ref, *out_refs):
        a11_ref, mse_ref = out_refs[0], out_refs[1]
        g_refs = out_refs[2:2 + S]
        ms_refs = out_refs[2 + S:]          # only for steps[1:]

        p = p_ref[...]                      # (1, H, W)
        t = t_ref[...]
        m = m_ref[...]
        _, H, W = p.shape

        # ---- normal-equation sums + per-image 2x2 solve ----
        mp = m * p
        a00 = jnp.sum(mp * p, axis=(1, 2), keepdims=True)
        a01 = jnp.sum(mp, axis=(1, 2), keepdims=True)
        a11 = jnp.sum(m, axis=(1, 2), keepdims=True)
        b0 = jnp.sum(mp * t, axis=(1, 2), keepdims=True)
        b1 = jnp.sum(m * t, axis=(1, 2), keepdims=True)
        a11_ref[...] = a11

        det = a00 * a11 - a01 * a01
        ok = det != 0.0
        det_s = jnp.where(ok, det, 1.0)
        sc = jnp.where(ok, (a11 * b0 - a01 * b1) / det_s, 0.0)
        sh = jnp.where(ok, (-a01 * b0 + a00 * b1) / det_s, 0.0)

        # ---- masked residual + MSE numerator (d = m*res shared with grads) ----
        res = sc * p + sh - t
        d = m * res
        mse_ref[...] = jnp.sum(d * res, axis=(1, 2), keepdims=True)

        if S == 0:
            return

        # ---- scale s = 1: full resolution, no subsample masks needed ----
        g0 = jnp.zeros((1, 1, 1), jnp.float32)
        if W > 1:
            g0 = g0 + jnp.sum(jnp.abs(d[:, :, 1:] - d[:, :, :W - 1])
                              * (m[:, :, 1:] * m[:, :, :W - 1]),
                              axis=(1, 2), keepdims=True)
        if H > 1:
            g0 = g0 + jnp.sum(jnp.abs(d[:, 1:, :] - d[:, :H - 1, :])
                              * (m[:, 1:, :] * m[:, :H - 1, :]),
                              axis=(1, 2), keepdims=True)
        g_refs[0][...] = g0

        # ---- scales s >= 2: sublane-strided row loads + (1,1,W) column mask ----
        col = lax.broadcasted_iota(jnp.int32, (1, 1, W), 2)
        for i, s in enumerate(steps[1:], start=1):
            n_s = (H + s - 1) // s                    # rows 0, s, 2s, ...
            rows = pl.ds(0, n_s, stride=s)
            ps = p_ref[:, rows, :]
            ts = t_ref[:, rows, :]
            msub = m_ref[:, rows, :]
            dsub = msub * (sc * ps + sh - ts)
            cmask = (col & (s - 1)) == 0              # col % s == 0 (s power of 2)

            ms_refs[i - 1][...] = jnp.sum(jnp.where(cmask, msub, 0.0),
                                          axis=(1, 2), keepdims=True)

            gi = jnp.zeros((1, 1, 1), jnp.float32)
            if W > s:
                gx = (jnp.abs(dsub[:, :, s:] - dsub[:, :, :W - s])
                      * (msub[:, :, s:] * msub[:, :, :W - s]))
                gi = gi + jnp.sum(jnp.where(cmask[:, :, :W - s], gx, 0.0),
                                  axis=(1, 2), keepdims=True)
            if n_s > 1:
                gy = (jnp.abs(dsub[:, 1:, :] - dsub[:, :n_s - 1, :])
                      * (msub[:, 1:, :] * msub[:, :n_s - 1, :]))
                gi = gi + jnp.sum(jnp.where(cmask, gy, 0.0),
                                  axis=(1, 2), keepdims=True)
            g_refs[i][...] = gi

    return kernel


def _fused_whole_image(p, t, m, steps, alpha, img_block_bytes):
    B, H, W = p.shape
    S = len(steps)
    n_out = 2 + S + max(S - 1, 0)

    img_spec = pl.BlockSpec((1, H, W), lambda b: (b, 0, 0))
    vec_spec = pl.BlockSpec((1, 1, 1), lambda b: (b, 0, 0))
    vmem_limit = int(min(48 << 20, max(32 << 20, 20 * img_block_bytes)))

    outs = pl.pallas_call(
        _make_whole_image_kernel(steps),
        grid=(B,),
        in_specs=[img_spec, img_spec, img_spec],
        out_specs=tuple([vec_spec] * n_out),
        out_shape=tuple([jax.ShapeDtypeStruct((B, 1, 1), jnp.float32)] * n_out),
        compiler_params=pltpu.CompilerParams(
            dimension_semantics=("parallel",),
            vmem_limit_bytes=vmem_limit),
        cost_estimate=pl.CostEstimate(
            flops=int((14 + 10 * max(S, 1)) * B * H * W),
            transcendentals=0,
            bytes_accessed=int(3 * B * H * W * 4)),
    )(p, t, m)

    a11, mse = outs[0], outs[1]
    total = _safe_div(jnp.sum(mse), 2.0 * jnp.sum(a11))
    if S > 0:
        g = outs[2:2 + S]
        ms = outs[2 + S:]
        reg = _safe_div(jnp.sum(g[0]), jnp.sum(a11))      # M at s=1 is sum(mask)
        for j in range(S - 1):
            reg = reg + _safe_div(jnp.sum(g[1 + j]), jnp.sum(ms[j]))
        total = total + alpha * reg
    return total


# ----------------------------------------------------------------------------
# Fallback two-pass streaming path (images too large for VMEM).
# Pass 1: per-image normal-equation sums accumulated across H-chunks.
# ----------------------------------------------------------------------------
def _sums_kernel(p_ref, t_ref, m_ref, a00_ref, a01_ref, a11_ref, b0_ref, b1_ref):
    h = pl.program_id(1)

    @pl.when(h == 0)
    def _():
        for r in (a00_ref, a01_ref, a11_ref, b0_ref, b1_ref):
            r[...] = jnp.zeros_like(r)

    p = p_ref[...]                          # (1, TH, W)
    t = t_ref[...]
    m = m_ref[...]
    mp = m * p
    a00_ref[...] += jnp.sum(mp * p, axis=(1, 2), keepdims=True)
    a01_ref[...] += jnp.sum(mp, axis=(1, 2), keepdims=True)
    a11_ref[...] += jnp.sum(m, axis=(1, 2), keepdims=True)
    b0_ref[...] += jnp.sum(mp * t, axis=(1, 2), keepdims=True)
    b1_ref[...] += jnp.sum(m * t, axis=(1, 2), keepdims=True)


# Pass 2: fused MSE + multi-scale gradient sums (reads p/t/m once per chunk).
def _make_chunked_grad_kernel(steps, TH, W, NH, halo):
    S = len(steps)
    sub_steps = steps[1:]
    SS = len(sub_steps)

    def kernel(p_ref, t_ref, m_ref, sc_ref, sh_ref, *rest):
        mse_ref = rest[0]
        g_refs = rest[1:1 + S]
        ms_refs = rest[1 + S:1 + S + SS]
        prev_d_ref = rest[1 + S + SS]
        prev_m_ref = rest[1 + S + SS + 1]

        h = pl.program_id(1)

        @pl.when(h == 0)
        def _():
            mse_ref[...] = jnp.zeros_like(mse_ref)
            for r in g_refs:
                r[...] = jnp.zeros_like(r)
            for r in ms_refs:
                r[...] = jnp.zeros_like(r)

        p = p_ref[...]                      # (1, TH, W)
        t = t_ref[...]
        m = m_ref[...]
        sc = sc_ref[...]
        sh = sh_ref[...]
        res = sc * p + sh - t
        d = m * res                          # masked diff, shared with MSE
        mse_ref[...] += jnp.sum(d * res, axis=(1, 2), keepdims=True)

        if S == 0:
            return

        # scale s = 1: full resolution, no subsample masks
        if W > 1:
            g_refs[0][...] += jnp.sum(jnp.abs(d[:, :, 1:] - d[:, :, :W - 1])
                                      * (m[:, :, 1:] * m[:, :, :W - 1]),
                                      axis=(1, 2), keepdims=True)
        if TH > 1:
            g_refs[0][...] += jnp.sum(jnp.abs(d[:, 1:, :] - d[:, :TH - 1, :])
                                      * (m[:, 1:, :] * m[:, :TH - 1, :]),
                                      axis=(1, 2), keepdims=True)

        col = lax.broadcasted_iota(jnp.int32, (1, 1, W), 2)

        # scales s >= 2: sublane-strided row subsampling (TH % s == 0) + col mask
        for j, s in enumerate(sub_steps):
            n_s = TH // s
            rows = pl.ds(0, n_s, stride=s)
            ps = p_ref[:, rows, :]
            ts = t_ref[:, rows, :]
            msk = m_ref[:, rows, :]
            dsub = msk * (sc * ps + sh - ts)
            cmask = (col & (s - 1)) == 0

            ms_refs[j][...] += jnp.sum(jnp.where(cmask, msk, 0.0),
                                       axis=(1, 2), keepdims=True)
            if W > s:
                gx = (jnp.abs(dsub[:, :, s:] - dsub[:, :, :W - s])
                      * (msk[:, :, s:] * msk[:, :, :W - s]))
                g_refs[1 + j][...] += jnp.sum(jnp.where(cmask[:, :, :W - s], gx, 0.0),
                                              axis=(1, 2), keepdims=True)
            if n_s > 1:
                gy = (jnp.abs(dsub[:, 1:, :] - dsub[:, :n_s - 1, :])
                      * (msk[:, 1:, :] * msk[:, :n_s - 1, :]))
                g_refs[1 + j][...] += jnp.sum(jnp.where(cmask, gy, 0.0),
                                              axis=(1, 2), keepdims=True)

        if NH > 1:
            # Vertical pairs straddling the chunk boundary: since TH % s == 0,
            # the only such pair per step s is global rows (h*TH - s, h*TH);
            # the upper row lives in the halo carried in VMEM scratch.
            @pl.when(h > 0)
            def _():
                d0 = d[:, 0:1, :]
                m0 = m[:, 0:1, :]
                for i, s in enumerate(steps):
                    pd = prev_d_ref[:, halo - s:halo - s + 1, :]
                    pm = prev_m_ref[:, halo - s:halo - s + 1, :]
                    bnd = jnp.abs(d0 - pd) * (m0 * pm)
                    if s > 1:
                        bnd = jnp.where((col & (s - 1)) == 0, bnd, 0.0)
                    g_refs[i][...] += jnp.sum(bnd, axis=(1, 2), keepdims=True)

            # update halo with the last rows of this chunk (skip on last chunk)
            @pl.when(h < NH - 1)
            def _():
                prev_d_ref[...] = d[:, TH - halo:, :]
                prev_m_ref[...] = m[:, TH - halo:, :]

    return kernel


def _two_pass(p, t, m, steps, alpha, block_rows):
    B, H, W = p.shape
    S = len(steps)
    halo = steps[-1] if steps else 1
    align = max(8, halo)

    if block_rows is not None:
        TH = int(block_rows)
        if H % TH != 0 or TH % align != 0:
            raise ValueError(f"block_rows must divide H and be a multiple of "
                             f"{align}; got {TH} for H={H}")
    else:
        # Zero-padding H is loss-invariant (padded mask rows are 0).
        if H % align != 0:
            pad = _round_up(H, align) - H
            p = jnp.pad(p, ((0, 0), (0, pad), (0, 0)))
            t = jnp.pad(t, ((0, 0), (0, pad), (0, 0)))
            m = jnp.pad(m, ((0, 0), (0, pad), (0, 0)))
            H = H + pad
        TH = _choose_block_rows(H, W, align)
    NH = H // TH

    img_spec = pl.BlockSpec((1, TH, W), lambda b, h: (b, h, 0))
    vec_spec = pl.BlockSpec((1, 1, 1), lambda b, h: (b, 0, 0))
    grid = (B, NH)

    w_pad = _round_up(W, 128)
    block_bytes = 4 * TH * w_pad
    vmem_limit = int(min(48 << 20, max(32 << 20, 8 * block_bytes + (4 << 20))))
    cparams = pltpu.CompilerParams(
        dimension_semantics=("parallel", "arbitrary"),
        vmem_limit_bytes=vmem_limit)
    bytes_img = int(B * H * W * 4)

    # ---- pass 1: normal-equation sums --------------------------------------
    a00, a01, a11, b0, b1 = pl.pallas_call(
        _sums_kernel,
        grid=grid,
        in_specs=[img_spec, img_spec, img_spec],
        out_specs=tuple([vec_spec] * 5),
        out_shape=tuple([jax.ShapeDtypeStruct((B, 1, 1), jnp.float32)] * 5),
        compiler_params=cparams,
        cost_estimate=pl.CostEstimate(flops=int(8 * B * H * W), transcendentals=0,
                                      bytes_accessed=3 * bytes_img),
    )(p, t, m)

    # tiny scalar glue: 2x2 solve with det==0 guard (matches torch's nonzero())
    det = a00 * a11 - a01 * a01
    valid = det != 0.0
    det_safe = jnp.where(valid, det, 1.0)
    scale = jnp.where(valid, (a11 * b0 - a01 * b1) / det_safe, 0.0)   # (B,1,1)
    shift = jnp.where(valid, (-a01 * b0 + a00 * b1) / det_safe, 0.0)  # (B,1,1)

    # ---- pass 2: fused MSE + multi-scale gradients --------------------------
    n_out = 1 + S + max(S - 1, 0)
    kernel = _make_chunked_grad_kernel(steps, TH, W, NH, halo)
    outs = pl.pallas_call(
        kernel,
        grid=grid,
        in_specs=[img_spec, img_spec, img_spec, vec_spec, vec_spec],
        out_specs=tuple([vec_spec] * n_out),
        out_shape=tuple([jax.ShapeDtypeStruct((B, 1, 1), jnp.float32)] * n_out),
        scratch_shapes=[pltpu.VMEM((1, halo, W), jnp.float32),
                        pltpu.VMEM((1, halo, W), jnp.float32)],
        compiler_params=cparams,
        cost_estimate=pl.CostEstimate(flops=int((8 + 9 * max(S, 1)) * B * H * W),
                                      transcendentals=0,
                                      bytes_accessed=3 * bytes_img),
    )(p, t, m, scale, shift)

    mse = outs[0]
    total = _safe_div(jnp.sum(mse), 2.0 * jnp.sum(a11))
    if S > 0:
        g = outs[1:1 + S]
        ms = outs[1 + S:]
        reg = _safe_div(jnp.sum(g[0]), jnp.sum(a11))      # M at s=1 is sum(mask)
        for j in range(S - 1):
            reg = reg + _safe_div(jnp.sum(g[1 + j]), jnp.sum(ms[j]))
        total = total + alpha * reg
    return total


# ----------------------------------------------------------------------------
# Public wrapper (forward of ScaleAndShiftInvariantLoss, batch-based reduction)
# ----------------------------------------------------------------------------
def scale_and_shift_invariant_loss(prediction, target, mask, alpha=0.5, scales=4,
                                   block_rows=None, force_two_pass=False):
    B, H, W = prediction.shape
    p = prediction.astype(jnp.float32)
    t = target.astype(jnp.float32)
    m = mask.astype(jnp.float32)

    use_grad = (alpha > 0) and (scales > 0)
    steps = tuple(2 ** s for s in range(scales)) if use_grad else ()

    # Whole-image fused path when one (padded) image block fits VMEM comfortably
    # (3 inputs x 2 pipeline buffers x padded block + in-kernel temporaries).
    img_block_bytes = 4 * _round_up(H, 8) * _round_up(W, 128)
    fused_ok = (not force_two_pass) and (block_rows is None) \
               and (6 * img_block_bytes <= (12 << 20))

    if fused_ok:
        return _fused_whole_image(p, t, m, steps, alpha, img_block_bytes)
    return _two_pass(p, t, m, steps, alpha, block_rows)


# ----------------------------------------------------------------------------
# Pure-JAX reference (mirrors the PyTorch math) for verification
# ----------------------------------------------------------------------------
def _reference_loss(p, t, m, alpha=0.5, scales=4):
    p = p.astype(jnp.float32)
    t = t.astype(jnp.float32)
    m = m.astype(jnp.float32)

    def s2(x):
        return jnp.sum(x, axis=(1, 2))

    a00, a01, a11 = s2(m * p * p), s2(m * p), s2(m)
    b0, b1 = s2(m * p * t), s2(m * t)
    det = a00 * a11 - a01 * a01
    ds = jnp.where(det == 0, 1.0, det)
    x0 = jnp.where(det == 0, 0.0, (a11 * b0 - a01 * b1) / ds)
    x1 = jnp.where(det == 0, 0.0, (-a01 * b0 + a00 * b1) / ds)
    pssi = x0[:, None, None] * p + x1[:, None, None]

    res = pssi - t
    total = _safe_div(jnp.sum(s2(m * res * res)), 2.0 * jnp.sum(a11))

    if alpha > 0:
        reg = 0.0
        for s in range(scales):
            step = 2 ** s
            ps, ts, ms = pssi[:, ::step, ::step], t[:, ::step, ::step], m[:, ::step, ::step]
            d = ms * (ps - ts)
            gx = jnp.abs(d[:, :, 1:] - d[:, :, :-1]) * ms[:, :, 1:] * ms[:, :, :-1]
            gy = jnp.abs(d[:, 1:, :] - d[:, :-1, :]) * ms[:, 1:, :] * ms[:, :-1, :]
            il = s2(gx) + s2(gy)
            reg = reg + _safe_div(jnp.sum(il), jnp.sum(s2(ms)))
        total = total + alpha * reg
    return total


if __name__ == "__main__":
    key = jax.random.PRNGKey(0)
    ks = jax.random.split(key, 9)

    # Case 1: B=2, 32x32 — fused whole-image path + chunked two-pass (halo) path.
    B, H, W = 2, 32, 32
    p1 = jax.random.normal(ks[0], (B, H, W), dtype=jnp.float32)
    t1 = jax.random.normal(ks[1], (B, H, W), dtype=jnp.float32)
    m1 = (jax.random.uniform(ks[2], (B, H, W)) > 0.3).astype(jnp.float32)
    ref1 = _reference_loss(p1, t1, m1, alpha=0.5, scales=4)
    out1a = jax.block_until_ready(scale_and_shift_invariant_loss(p1, t1, m1))
    out1b = jax.block_until_ready(
        scale_and_shift_invariant_loss(p1, t1, m1, force_two_pass=True, block_rows=8))
    for o in (out1a, out1b):
        assert jnp.isfinite(o), o
        assert jnp.allclose(o, ref1, rtol=5e-4, atol=1e-5), (o, ref1)

    # Case 2: non-pow2 spatial dims + an all-zero-mask image (det == 0 path),
    # both the fused path and the chunked path (cross-boundary halo exercised).
    B2, H2, W2 = 2, 24, 20
    p2 = jax.random.normal(ks[3], (B2, H2, W2), dtype=jnp.float32)
    t2 = jax.random.normal(ks[4], (B2, H2, W2), dtype=jnp.float32)
    m2 = (jax.random.uniform(ks[5], (B2, H2, W2)) > 0.4).astype(jnp.float32)
    m2 = m2.at[1].set(0.0)
    ref2 = _reference_loss(p2, t2, m2, alpha=0.5, scales=4)
    out2a = jax.block_until_ready(scale_and_shift_invariant_loss(p2, t2, m2))
    out2b = jax.block_until_ready(
        scale_and_shift_invariant_loss(p2, t2, m2, force_two_pass=True, block_rows=8))
    for o in (out2a, out2b):
        assert jnp.isfinite(o), o
        assert jnp.allclose(o, ref2, rtol=5e-4, atol=1e-5), (o, ref2)

    # Case 3: H not a multiple of 8 — exercises the two-pass H zero-padding path.
    B3, H3, W3 = 2, 20, 20
    p3 = jax.random.normal(ks[6], (B3, H3, W3), dtype=jnp.float32)
    t3 = jax.random.normal(ks[7], (B3, H3, W3), dtype=jnp.float32)
    m3 = (jax.random.uniform(ks[8], (B3, H3, W3)) > 0.3).astype(jnp.float32)
    ref3 = _reference_loss(p3, t3, m3, alpha=0.5, scales=4)
    out3 = jax.block_until_ready(
        scale_and_shift_invariant_loss(p3, t3, m3, force_two_pass=True))
    assert jnp.isfinite(out3), out3
    assert jnp.allclose(out3, ref3, rtol=5e-4, atol=1e-5), (out3, ref3)

    print("KERNEL_OK")
</pallas_src>

<mosaic_0001>
module attributes {stable_mosaic.version = 11 : i64} {
  func.func @kernel(%arg0: i32, %arg1: memref<1x32x32xf32, #tpu.memory_space<vmem>>, %arg2: memref<1x32x32xf32, #tpu.memory_space<vmem>>, %arg3: memref<1x32x32xf32, #tpu.memory_space<vmem>>, %arg4: memref<1x1x1xf32, #tpu.memory_space<vmem>>, %arg5: memref<1x1x1xf32, #tpu.memory_space<vmem>>, %arg6: memref<1x1x1xf32, #tpu.memory_space<vmem>>, %arg7: memref<1x1x1xf32, #tpu.memory_space<vmem>>, %arg8: memref<1x1x1xf32, #tpu.memory_space<vmem>>, %arg9: memref<1x1x1xf32, #tpu.memory_space<vmem>>, %arg10: memref<1x1x1xf32, #tpu.memory_space<vmem>>, %arg11: memref<1x1x1xf32, #tpu.memory_space<vmem>>, %arg12: memref<1x1x1xf32, #tpu.memory_space<vmem>>) attributes {dimension_semantics = [#tpu.dimension_semantics<parallel>], iteration_bounds = array<i64: 2>, scalar_prefetch = 0 : i64, scratch_operands = 0 : i64, tpu.core_type = #tpu.core_type<tc>, window_params = [{transform_indices = @transform_0, window_bounds = array<i64: 1, 32, 32>}, {transform_indices = @transform_1, window_bounds = array<i64: 1, 32, 32>}, {transform_indices = @transform_2, window_bounds = array<i64: 1, 32, 32>}, {transform_indices = @transform_3, window_bounds = array<i64: 1, 1, 1>}, {transform_indices = @transform_4, window_bounds = array<i64: 1, 1, 1>}, {transform_indices = @transform_5, window_bounds = array<i64: 1, 1, 1>}, {transform_indices = @transform_6, window_bounds = array<i64: 1, 1, 1>}, {transform_indices = @transform_7, window_bounds = array<i64: 1, 1, 1>}, {transform_indices = @transform_8, window_bounds = array<i64: 1, 1, 1>}, {transform_indices = @transform_9, window_bounds = array<i64: 1, 1, 1>}, {transform_indices = @transform_10, window_bounds = array<i64: 1, 1, 1>}, {transform_indices = @transform_11, window_bounds = array<i64: 1, 1, 1>}]} {
    %c0 = arith.constant 0 : index
    %c0_0 = arith.constant 0 : index
    %c0_1 = arith.constant 0 : index
    %0 = vector.load %arg1[%c0, %c0_0, %c0_1] : memref<1x32x32xf32, #tpu.memory_space<vmem>>, vector<1x32x32xf32>
    %c0_2 = arith.constant 0 : index
    %c0_3 = arith.constant 0 : index
    %c0_4 = arith.constant 0 : index
    %1 = vector.load %arg2[%c0_2, %c0_3, %c0_4] : memref<1x32x32xf32, #tpu.memory_space<vmem>>, vector<1x32x32xf32>
    %c0_5 = arith.constant 0 : index
    %c0_6 = arith.constant 0 : index
    %c0_7 = arith.constant 0 : index
    %2 = vector.load %arg3[%c0_5, %c0_6, %c0_7] : memref<1x32x32xf32, #tpu.memory_space<vmem>>, vector<1x32x32xf32>
    %3 = arith.mulf %2, %0 : vector<1x32x32xf32>
    %4 = arith.mulf %3, %0 : vector<1x32x32xf32>
    %cst = arith.constant dense<0.000000e+00> : vector<1xf32>
    %5 = vector.multi_reduction <add>, %4, %cst [1, 2] : vector<1x32x32xf32> to vector<1xf32>
    %6 = vector.shape_cast %5 : vector<1xf32> to vector<1x1x1xf32>
    %cst_8 = arith.constant dense<0.000000e+00> : vector<1xf32>
    %7 = vector.multi_reduction <add>, %3, %cst_8 [1, 2] : vector<1x32x32xf32> to vector<1xf32>
    %8 = vector.shape_cast %7 : vector<1xf32> to vector<1x1x1xf32>
    %cst_9 = arith.constant dense<0.000000e+00> : vector<1xf32>
    %9 = vector.multi_reduction <add>, %2, %cst_9 [1, 2] : vector<1x32x32xf32> to vector<1xf32>
    %10 = vector.shape_cast %9 : vector<1xf32> to vector<1x1x1xf32>
    %11 = arith.mulf %3, %1 : vector<1x32x32xf32>
    %cst_10 = arith.constant dense<0.000000e+00> : vector<1xf32>
    %12 = vector.multi_reduction <add>, %11, %cst_10 [1, 2] : vector<1x32x32xf32> to vector<1xf32>
    %13 = vector.shape_cast %12 : vector<1xf32> to vector<1x1x1xf32>
    %14 = arith.mulf %2, %1 : vector<1x32x32xf32>
    %cst_11 = arith.constant dense<0.000000e+00> : vector<1xf32>
    %15 = vector.multi_reduction <add>, %14, %cst_11 [1, 2] : vector<1x32x32xf32> to vector<1xf32>
    %16 = vector.shape_cast %15 : vector<1xf32> to vector<1x1x1xf32>
    %c0_12 = arith.constant 0 : index
    %c0_13 = arith.constant 0 : index
    %c0_14 = arith.constant 0 : index
    %17 = vector.load %arg4[%c0_12, %c0_13, %c0_14] : memref<1x1x1xf32, #tpu.memory_space<vmem>>, vector<1x1x1xf32>
    tpu.vector_store %arg4[%c0_12, %c0_13, %c0_14], %10 {strides = array<i32>} : memref<1x1x1xf32, #tpu.memory_space<vmem>>, vector<1x1x1xf32>,
    %18 = arith.mulf %6, %10 : vector<1x1x1xf32>
    %19 = arith.mulf %8, %8 : vector<1x1x1xf32>
    %20 = arith.subf %18, %19 : vector<1x1x1xf32>
    %cst_15 = arith.constant 0.000000e+00 : f32
    %21 = vector.broadcast %cst_15 : f32 to vector<1x1x1xf32>
    %22 = arith.cmpf one, %20, %21 : vector<1x1x1xf32>
    %cst_16 = arith.constant 1.000000e+00 : f32
    %23 = vector.broadcast %cst_16 : f32 to vector<1x1x1xf32>
    %24 = arith.select %22, %20, %23 : vector<1x1x1xi1>, vector<1x1x1xf32>
    %25 = arith.mulf %10, %13 : vector<1x1x1xf32>
    %26 = arith.mulf %8, %16 : vector<1x1x1xf32>
    %27 = arith.subf %25, %26 : vector<1x1x1xf32>
    %28 = arith.divf %27, %24 : vector<1x1x1xf32>
    %cst_17 = arith.constant 0.000000e+00 : f32
    %29 = vector.broadcast %cst_17 : f32 to vector<1x1x1xf32>
    %30 = arith.select %22, %28, %29 : vector<1x1x1xi1>, vector<1x1x1xf32>
    %cst_18 = arith.constant 0.000000e+00 : f32
    %31 = vector.broadcast %cst_18 : f32 to vector<1x1x1xf32>
    %32 = arith.subf %31, %8 : vector<1x1x1xf32>
    %33 = arith.mulf %32, %13 : vector<1x1x1xf32>
    %34 = arith.mulf %6, %16 : vector<1x1x1xf32>
    %35 = arith.addf %33, %34 : vector<1x1x1xf32>
    %36 = arith.divf %35, %24 : vector<1x1x1xf32>
    %cst_19 = arith.constant 0.000000e+00 : f32
    %37 = vector.broadcast %cst_19 : f32 to vector<1x1x1xf32>
    %38 = arith.select %22, %36, %37 : vector<1x1x1xi1>, vector<1x1x1xf32>
    %39 = vector.broadcast %30 : vector<1x1x1xf32> to vector<1x32x32xf32>
    %40 = arith.mulf %39, %0 : vector<1x32x32xf32>
    %41 = vector.broadcast %38 : vector<1x1x1xf32> to vector<1x32x32xf32>
    %42 = arith.addf %40, %41 : vector<1x32x32xf32>
    %43 = arith.subf %42, %1 : vector<1x32x32xf32>
    %44 = arith.mulf %2, %43 : vector<1x32x32xf32>
    %45 = arith.mulf %44, %43 : vector<1x32x32xf32>
    %cst_20 = arith.constant dense<0.000000e+00> : vector<1xf32>
    %46 = vector.multi_reduction <add>, %45, %cst_20 [1, 2] : vector<1x32x32xf32> to vector<1xf32>
    %47 = vector.shape_cast %46 : vector<1xf32> to vector<1x1x1xf32>
    %c0_21 = arith.constant 0 : index
    %c0_22 = arith.constant 0 : index
    %c0_23 = arith.constant 0 : index
    %48 = vector.load %arg5[%c0_21, %c0_22, %c0_23] : memref<1x1x1xf32, #tpu.memory_space<vmem>>, vector<1x1x1xf32>
    tpu.vector_store %arg5[%c0_21, %c0_22, %c0_23], %47 {strides = array<i32>} : memref<1x1x1xf32, #tpu.memory_space<vmem>>, vector<1x1x1xf32>,
    %cst_24 = arith.constant 0.000000e+00 : f32
    %49 = vector.broadcast %cst_24 : f32 to vector<1x1x1xf32>
    %50 = vector.extract_strided_slice %44 {offsets = [0, 0, 1], sizes = [1, 32, 31], strides = [1, 1, 1]} : vector<1x32x32xf32> to vector<1x32x31xf32>
    %51 = vector.extract_strided_slice %44 {offsets = [0, 0, 0], sizes = [1, 32, 31], strides = [1, 1, 1]} : vector<1x32x32xf32> to vector<1x32x31xf32>
    %52 = arith.subf %50, %51 : vector<1x32x31xf32>
    %53 = math.absf %52 : vector<1x32x31xf32>
    %54 = vector.extract_strided_slice %2 {offsets = [0, 0, 1], sizes = [1, 32, 31], strides = [1, 1, 1]} : vector<1x32x32xf32> to vector<1x32x31xf32>
    %55 = vector.extract_strided_slice %2 {offsets = [0, 0, 0], sizes = [1, 32, 31], strides = [1, 1, 1]} : vector<1x32x32xf32> to vector<1x32x31xf32>
    %56 = arith.mulf %54, %55 : vector<1x32x31xf32>
    %57 = arith.mulf %53, %56 : vector<1x32x31xf32>
    %cst_25 = arith.constant dense<0.000000e+00> : vector<1xf32>
    %58 = vector.multi_reduction <add>, %57, %cst_25 [1, 2] : vector<1x32x31xf32> to vector<1xf32>
    %59 = vector.shape_cast %58 : vector<1xf32> to vector<1x1x1xf32>
    %60 = arith.addf %49, %59 : vector<1x1x1xf32>
    %61 = vector.extract_strided_slice %44 {offsets = [0, 1, 0], sizes = [1, 31, 32], strides = [1, 1, 1]} : vector<1x32x32xf32> to vector<1x31x32xf32>
    %62 = vector.extract_strided_slice %44 {offsets = [0, 0, 0], sizes = [1, 31, 32], strides = [1, 1, 1]} : vector<1x32x32xf32> to vector<1x31x32xf32>
    %63 = arith.subf %61, %62 : vector<1x31x32xf32>
    %64 = math.absf %63 : vector<1x31x32xf32>
    %65 = vector.extract_strided_slice %2 {offsets = [0, 1, 0], sizes = [1, 31, 32], strides = [1, 1, 1]} : vector<1x32x32xf32> to vector<1x31x32xf32>
    %66 = vector.extract_strided_slice %2 {offsets = [0, 0, 0], sizes = [1, 31, 32], strides = [1, 1, 1]} : vector<1x32x32xf32> to vector<1x31x32xf32>
    %67 = arith.mulf %65, %66 : vector<1x31x32xf32>
    %68 = arith.mulf %64, %67 : vector<1x31x32xf32>
    %cst_26 = arith.constant dense<0.000000e+00> : vector<1xf32>
    %69 = vector.multi_reduction <add>, %68, %cst_26 [1, 2] : vector<1x31x32xf32> to vector<1xf32>
    %70 = vector.shape_cast %69 : vector<1xf32> to vector<1x1x1xf32>
    %71 = arith.addf %60, %70 : vector<1x1x1xf32>
    %c0_27 = arith.constant 0 : index
    %c0_28 = arith.constant 0 : index
    %c0_29 = arith.constant 0 : index
    %72 = vector.load %arg6[%c0_27, %c0_28, %c0_29] : memref<1x1x1xf32, #tpu.memory_space<vmem>>, vector<1x1x1xf32>
    tpu.vector_store %arg6[%c0_27, %c0_28, %c0_29], %71 {strides = array<i32>} : memref<1x1x1xf32, #tpu.memory_space<vmem>>, vector<1x1x1xf32>,
    %73 = tpu.iota {dimensions = array<i32: 2>} : vector<1x1x32xi32>
    %c0_30 = arith.constant 0 : index
    %c0_31 = arith.constant 0 : index
    %c0_32 = arith.constant 0 : index
    %74 = tpu.strided_load %arg1[%c0_30, %c0_31, %c0_32] {strides = array<i32: 1, 2, 1>} : memref<1x32x32xf32, #tpu.memory_space<vmem>>, vector<1x16x32xf32>
    %c0_33 = arith.constant 0 : index
    %c0_34 = arith.constant 0 : index
    %c0_35 = arith.constant 0 : index
    %75 = tpu.strided_load %arg2[%c0_33, %c0_34, %c0_35] {strides = array<i32: 1, 2, 1>} : memref<1x32x32xf32, #tpu.memory_space<vmem>>, vector<1x16x32xf32>
    %c0_36 = arith.constant 0 : index
    %c0_37 = arith.constant 0 : index
    %c0_38 = arith.constant 0 : index
    %76 = tpu.strided_load %arg3[%c0_36, %c0_37, %c0_38] {strides = array<i32: 1, 2, 1>} : memref<1x32x32xf32, #tpu.memory_space<vmem>>, vector<1x16x32xf32>
    %77 = vector.broadcast %30 : vector<1x1x1xf32> to vector<1x16x32xf32>
    %78 = arith.mulf %77, %74 : vector<1x16x32xf32>
    %79 = vector.broadcast %38 : vector<1x1x1xf32> to vector<1x16x32xf32>
    %80 = arith.addf %78, %79 : vector<1x16x32xf32>
    %81 = arith.subf %80, %75 : vector<1x16x32xf32>
    %82 = arith.mulf %76, %81 : vector<1x16x32xf32>
    %c1_i32 = arith.constant 1 : i32
    %83 = vector.broadcast %c1_i32 : i32 to vector<1x1x32xi32>
    %84 = arith.andi %73, %83 : vector<1x1x32xi32>
    %c0_i32 = arith.constant 0 : i32
    %85 = vector.broadcast %c0_i32 : i32 to vector<1x1x32xi32>
    %86 = arith.cmpi eq, %84, %85 : vector<1x1x32xi32>
    %cst_39 = arith.constant 0.000000e+00 : f32
    %87 = vector.shape_cast %86 : vector<1x1x32xi1> to vector<1x1x32xi1>
    %88 = vector.broadcast %87 : vector<1x1x32xi1> to vector<1x16x32xi1>
    %89 = vector.broadcast %cst_39 : f32 to vector<1x16x32xf32>
    %90 = arith.select %88, %76, %89 : vector<1x16x32xi1>, vector<1x16x32xf32>
    %cst_40 = arith.constant dense<0.000000e+00> : vector<1xf32>
    %91 = vector.multi_reduction <add>, %90, %cst_40 [1, 2] : vector<1x16x32xf32> to vector<1xf32>
    %92 = vector.shape_cast %91 : vector<1xf32> to vector<1x1x1xf32>
    %c0_41 = arith.constant 0 : index
    %c0_42 = arith.constant 0 : index
    %c0_43 = arith.constant 0 : index
    %93 = vector.load %arg10[%c0_41, %c0_42, %c0_43] : memref<1x1x1xf32, #tpu.memory_space<vmem>>, vector<1x1x1xf32>
    tpu.vector_store %arg10[%c0_41, %c0_42, %c0_43], %92 {strides = array<i32>} : memref<1x1x1xf32, #tpu.memory_space<vmem>>, vector<1x1x1xf32>,
    %cst_44 = arith.constant 0.000000e+00 : f32
    %94 = vector.broadcast %cst_44 : f32 to vector<1x1x1xf32>
    %95 = vector.extract_strided_slice %82 {offsets = [0, 0, 2], sizes = [1, 16, 30], strides = [1, 1, 1]} : vector<1x16x32xf32> to vector<1x16x30xf32>
    %96 = vector.extract_strided_slice %82 {offsets = [0, 0, 0], sizes = [1, 16, 30], strides = [1, 1, 1]} : vector<1x16x32xf32> to vector<1x16x30xf32>
    %97 = arith.subf %95, %96 : vector<1x16x30xf32>
    %98 = math.absf %97 : vector<1x16x30xf32>
    %99 = vector.extract_strided_slice %76 {offsets = [0, 0, 2], sizes = [1, 16, 30], strides = [1, 1, 1]} : vector<1x16x32xf32> to vector<1x16x30xf32>
    %100 = vector.extract_strided_slice %76 {offsets = [0, 0, 0], sizes = [1, 16, 30], strides = [1, 1, 1]} : vector<1x16x32xf32> to vector<1x16x30xf32>
    %101 = arith.mulf %99, %100 : vector<1x16x30xf32>
    %102 = arith.mulf %98, %101 : vector<1x16x30xf32>
    %103 = vector.extract_strided_slice %86 {offsets = [0, 0, 0], sizes = [1, 1, 30], strides = [1, 1, 1]} : vector<1x1x32xi1> to vector<1x1x30xi1>
    %cst_45 = arith.constant 0.000000e+00 : f32
    %104 = vector.shape_cast %103 : vector<1x1x30xi1> to vector<1x1x30xi1>
    %105 = vector.broadcast %104 : vector<1x1x30xi1> to vector<1x16x30xi1>
    %106 = vector.broadcast %cst_45 : f32 to vector<1x16x30xf32>
    %107 = arith.select %105, %102, %106 : vector<1x16x30xi1>, vector<1x16x30xf32>
    %cst_46 = arith.constant dense<0.000000e+00> : vector<1xf32>
    %108 = vector.multi_reduction <add>, %107, %cst_46 [1, 2] : vector<1x16x30xf32> to vector<1xf32>
    %109 = vector.shape_cast %108 : vector<1xf32> to vector<1x1x1xf32>
    %110 = arith.addf %94, %109 : vector<1x1x1xf32>
    %111 = vector.extract_strided_slice %82 {offsets = [0, 1, 0], sizes = [1, 15, 32], strides = [1, 1, 1]} : vector<1x16x32xf32> to vector<1x15x32xf32>
    %112 = vector.extract_strided_slice %82 {offsets = [0, 0, 0], sizes = [1, 15, 32], strides = [1, 1, 1]} : vector<1x16x32xf32> to vector<1x15x32xf32>
    %113 = arith.subf %111, %112 : vector<1x15x32xf32>
    %114 = math.absf %113 : vector<1x15x32xf32>
    %115 = vector.extract_strided_slice %76 {offsets = [0, 1, 0], sizes = [1, 15, 32], strides = [1, 1, 1]} : vector<1x16x32xf32> to vector<1x15x32xf32>
    %116 = vector.extract_strided_slice %76 {offsets = [0, 0, 0], sizes = [1, 15, 32], strides = [1, 1, 1]} : vector<1x16x32xf32> to vector<1x15x32xf32>
    %117 = arith.mulf %115, %116 : vector<1x15x32xf32>
    %118 = arith.mulf %114, %117 : vector<1x15x32xf32>
    %cst_47 = arith.constant 0.000000e+00 : f32
    %119 = vector.shape_cast %86 : vector<1x1x32xi1> to vector<1x1x32xi1>
    %120 = vector.broadcast %119 : vector<1x1x32xi1> to vector<1x15x32xi1>
    %121 = vector.broadcast %cst_47 : f32 to vector<1x15x32xf32>
    %122 = arith.select %120, %118, %121 : vector<1x15x32xi1>, vector<1x15x32xf32>
    %cst_48 = arith.constant dense<0.000000e+00> : vector<1xf32>
    %123 = vector.multi_reduction <add>, %122, %cst_48 [1, 2] : vector<1x15x32xf32> to vector<1xf32>
    %124 = vector.shape_cast %123 : vector<1xf32> to vector<1x1x1xf32>
    %125 = arith.addf %110, %124 : vector<1x1x1xf32>
    %c0_49 = arith.constant 0 : index
    %c0_50 = arith.constant 0 : index
    %c0_51 = arith.constant 0 : index
    %126 = vector.load %arg7[%c0_49, %c0_50, %c0_51] : memref<1x1x1xf32, #tpu.memory_space<vmem>>, vector<1x1x1xf32>
    tpu.vector_store %arg7[%c0_49, %c0_50, %c0_51], %125 {strides = array<i32>} : memref<1x1x1xf32, #tpu.memory_space<vmem>>, vector<1x1x1xf32>,
    %c0_52 = arith.constant 0 : index
    %c0_53 = arith.constant 0 : index
    %c0_54 = arith.constant 0 : index
    %127 = tpu.strided_load %arg1[%c0_52, %c0_53, %c0_54] {strides = array<i32: 1, 4, 1>} : memref<1x32x32xf32, #tpu.memory_space<vmem>>, vector<1x8x32xf32>
    %c0_55 = arith.constant 0 : index
    %c0_56 = arith.constant 0 : index
    %c0_57 = arith.constant 0 : index
    %128 = tpu.strided_load %arg2[%c0_55, %c0_56, %c0_57] {strides = array<i32: 1, 4, 1>} : memref<1x32x32xf32, #tpu.memory_space<vmem>>, vector<1x8x32xf32>
    %c0_58 = arith.constant 0 : index
    %c0_59 = arith.constant 0 : index
    %c0_60 = arith.constant 0 : index
    %129 = tpu.strided_load %arg3[%c0_58, %c0_59, %c0_60] {strides = array<i32: 1, 4, 1>} : memref<1x32x32xf32, #tpu.memory_space<vmem>>, vector<1x8x32xf32>
    %130 = vector.broadcast %30 : vector<1x1x1xf32> to vector<1x8x32xf32>
    %131 = arith.mulf %130, %127 : vector<1x8x32xf32>
    %132 = vector.broadcast %38 : vector<1x1x1xf32> to vector<1x8x32xf32>
    %133 = arith.addf %131, %132 : vector<1x8x32xf32>
    %134 = arith.subf %133, %128 : vector<1x8x32xf32>
    %135 = arith.mulf %129, %134 : vector<1x8x32xf32>
    %c3_i32 = arith.constant 3 : i32
    %136 = vector.broadcast %c3_i32 : i32 to vector<1x1x32xi32>
    %137 = arith.andi %73, %136 : vector<1x1x32xi32>
    %c0_i32_61 = arith.constant 0 : i32
    %138 = vector.broadcast %c0_i32_61 : i32 to vector<1x1x32xi32>
    %139 = arith.cmpi eq, %137, %138 : vector<1x1x32xi32>
    %cst_62 = arith.constant 0.000000e+00 : f32
    %140 = vector.shape_cast %139 : vector<1x1x32xi1> to vector<1x1x32xi1>
    %141 = vector.broadcast %140 : vector<1x1x32xi1> to vector<1x8x32xi1>
    %142 = vector.broadcast %cst_62 : f32 to vector<1x8x32xf32>
    %143 = arith.select %141, %129, %142 : vector<1x8x32xi1>, vector<1x8x32xf32>
    %cst_63 = arith.constant dense<0.000000e+00> : vector<1xf32>
    %144 = vector.multi_reduction <add>, %143, %cst_63 [1, 2] : vector<1x8x32xf32> to vector<1xf32>
    %145 = vector.shape_cast %144 : vector<1xf32> to vector<1x1x1xf32>
    %c0_64 = arith.constant 0 : index
    %c0_65 = arith.constant 0 : index
    %c0_66 = arith.constant 0 : index
    %146 = vector.load %arg11[%c0_64, %c0_65, %c0_66] : memref<1x1x1xf32, #tpu.memory_space<vmem>>, vector<1x1x1xf32>
    tpu.vector_store %arg11[%c0_64, %c0_65, %c0_66], %145 {strides = array<i32>} : memref<1x1x1xf32, #tpu.memory_space<vmem>>, vector<1x1x1xf32>,
    %cst_67 = arith.constant 0.000000e+00 : f32
    %147 = vector.broadcast %cst_67 : f32 to vector<1x1x1xf32>
    %148 = vector.extract_strided_slice %135 {offsets = [0, 0, 4], sizes = [1, 8, 28], strides = [1, 1, 1]} : vector<1x8x32xf32> to vector<1x8x28xf32>
    %149 = vector.extract_strided_slice %135 {offsets = [0, 0, 0], sizes = [1, 8, 28], strides = [1, 1, 1]} : vector<1x8x32xf32> to vector<1x8x28xf32>
    %150 = arith.subf %148, %149 : vector<1x8x28xf32>
    %151 = math.absf %150 : vector<1x8x28xf32>
    %152 = vector.extract_strided_slice %129 {offsets = [0, 0, 4], sizes = [1, 8, 28], strides = [1, 1, 1]} : vector<1x8x32xf32> to vector<1x8x28xf32>
    %153 = vector.extract_strided_slice %129 {offsets = [0, 0, 0], sizes = [1, 8, 28], strides = [1, 1, 1]} : vector<1x8x32xf32> to vector<1x8x28xf32>
    %154 = arith.mulf %152, %153 : vector<1x8x28xf32>
    %155 = arith.mulf %151, %154 : vector<1x8x28xf32>
    %156 = vector.extract_strided_slice %139 {offsets = [0, 0, 0], sizes = [1, 1, 28], strides = [1, 1, 1]} : vector<1x1x32xi1> to vector<1x1x28xi1>
    %cst_68 = arith.constant 0.000000e+00 : f32
    %157 = vector.shape_cast %156 : vector<1x1x28xi1> to vector<1x1x28xi1>
    %158 = vector.broadcast %157 : vector<1x1x28xi1> to vector<1x8x28xi1>
    %159 = vector.broadcast %cst_68 : f32 to vector<1x8x28xf32>
    %160 = arith.select %158, %155, %159 : vector<1x8x28xi1>, vector<1x8x28xf32>
    %cst_69 = arith.constant dense<0.000000e+00> : vector<1xf32>
    %161 = vector.multi_reduction <add>, %160, %cst_69 [1, 2] : vector<1x8x28xf32> to vector<1xf32>
    %162 = vector.shape_cast %161 : vector<1xf32> to vector<1x1x1xf32>
    %163 = arith.addf %147, %162 : vector<1x1x1xf32>
    %164 = vector.extract_strided_slice %135 {offsets = [0, 1, 0], sizes = [1, 7, 32], strides = [1, 1, 1]} : vector<1x8x32xf32> to vector<1x7x32xf32>
    %165 = vector.extract_strided_slice %135 {offsets = [0, 0, 0], sizes = [1, 7, 32], strides = [1, 1, 1]} : vector<1x8x32xf32> to vector<1x7x32xf32>
    %166 = arith.subf %164, %165 : vector<1x7x32xf32>
    %167 = math.absf %166 : vector<1x7x32xf32>
    %168 = vector.extract_strided_slice %129 {offsets = [0, 1, 0], sizes = [1, 7, 32], strides = [1, 1, 1]} : vector<1x8x32xf32> to vector<1x7x32xf32>
    %169 = vector.extract_strided_slice %129 {offsets = [0, 0, 0], sizes = [1, 7, 32], strides = [1, 1, 1]} : vector<1x8x32xf32> to vector<1x7x32xf32>
    %170 = arith.mulf %168, %169 : vector<1x7x32xf32>
    %171 = arith.mulf %167, %170 : vector<1x7x32xf32>
    %cst_70 = arith.constant 0.000000e+00 : f32
    %172 = vector.shape_cast %139 : vector<1x1x32xi1> to vector<1x1x32xi1>
    %173 = vector.broadcast %172 : vector<1x1x32xi1> to vector<1x7x32xi1>
    %174 = vector.broadcast %cst_70 : f32 to vector<1x7x32xf32>
    %175 = arith.select %173, %171, %174 : vector<1x7x32xi1>, vector<1x7x32xf32>
    %cst_71 = arith.constant dense<0.000000e+00> : vector<1xf32>
    %176 = vector.multi_reduction <add>, %175, %cst_71 [1, 2] : vector<1x7x32xf32> to vector<1xf32>
    %177 = vector.shape_cast %176 : vector<1xf32> to vector<1x1x1xf32>
    %178 = arith.addf %163, %177 : vector<1x1x1xf32>
    %c0_72 = arith.constant 0 : index
    %c0_73 = arith.constant 0 : index
    %c0_74 = arith.constant 0 : index
    %179 = vector.load %arg8[%c0_72, %c0_73, %c0_74] : memref<1x1x1xf32, #tpu.memory_space<vmem>>, vector<1x1x1xf32>
    tpu.vector_store %arg8[%c0_72, %c0_73, %c0_74], %178 {strides = array<i32>} : memref<1x1x1xf32, #tpu.memory_space<vmem>>, vector<1x1x1xf32>,
    %c0_75 = arith.constant 0 : index
    %c0_76 = arith.constant 0 : index
    %c0_77 = arith.constant 0 : index
    %180 = tpu.strided_load %arg1[%c0_75, %c0_76, %c0_77] {strides = array<i32: 1, 8, 1>} : memref<1x32x32xf32, #tpu.memory_space<vmem>>, vector<1x4x32xf32>
    %c0_78 = arith.constant 0 : index
    %c0_79 = arith.constant 0 : index
    %c0_80 = arith.constant 0 : index
    %181 = tpu.strided_load %arg2[%c0_78, %c0_79, %c0_80] {strides = array<i32: 1, 8, 1>} : memref<1x32x32xf32, #tpu.memory_space<vmem>>, vector<1x4x32xf32>
    %c0_81 = arith.constant 0 : index
    %c0_82 = arith.constant 0 : index
    %c0_83 = arith.constant 0 : index
    %182 = tpu.strided_load %arg3[%c0_81, %c0_82, %c0_83] {strides = array<i32: 1, 8, 1>} : memref<1x32x32xf32, #tpu.memory_space<vmem>>, vector<1x4x32xf32>
    %183 = vector.broadcast %30 : vector<1x1x1xf32> to vector<1x4x32xf32>
    %184 = arith.mulf %183, %180 : vector<1x4x32xf32>
    %185 = vector.broadcast %38 : vector<1x1x1xf32> to vector<1x4x32xf32>
    %186 = arith.addf %184, %185 : vector<1x4x32xf32>
    %187 = arith.subf %186, %181 : vector<1x4x32xf32>
    %188 = arith.mulf %182, %187 : vector<1x4x32xf32>
    %c7_i32 = arith.constant 7 : i32
    %189 = vector.broadcast %c7_i32 : i32 to vector<1x1x32xi32>
    %190 = arith.andi %73, %189 : vector<1x1x32xi32>
    %c0_i32_84 = arith.constant 0 : i32
    %191 = vector.broadcast %c0_i32_84 : i32 to vector<1x1x32xi32>
    %192 = arith.cmpi eq, %190, %191 : vector<1x1x32xi32>
    %cst_85 = arith.constant 0.000000e+00 : f32
    %193 = vector.shape_cast %192 : vector<1x1x32xi1> to vector<1x1x32xi1>
    %194 = vector.broadcast %193 : vector<1x1x32xi1> to vector<1x4x32xi1>
    %195 = vector.broadcast %cst_85 : f32 to vector<1x4x32xf32>
    %196 = arith.select %194, %182, %195 : vector<1x4x32xi1>, vector<1x4x32xf32>
    %cst_86 = arith.constant dense<0.000000e+00> : vector<1xf32>
    %197 = vector.multi_reduction <add>, %196, %cst_86 [1, 2] : vector<1x4x32xf32> to vector<1xf32>
    %198 = vector.shape_cast %197 : vector<1xf32> to vector<1x1x1xf32>
    %c0_87 = arith.constant 0 : index
    %c0_88 = arith.constant 0 : index
    %c0_89 = arith.constant 0 : index
    %199 = vector.load %arg12[%c0_87, %c0_88, %c0_89] : memref<1x1x1xf32, #tpu.memory_space<vmem>>, vector<1x1x1xf32>
    tpu.vector_store %arg12[%c0_87, %c0_88, %c0_89], %198 {strides = array<i32>} : memref<1x1x1xf32, #tpu.memory_space<vmem>>, vector<1x1x1xf32>,
    %cst_90 = arith.constant 0.000000e+00 : f32
    %200 = vector.broadcast %cst_90 : f32 to vector<1x1x1xf32>
    %201 = vector.extract_strided_slice %188 {offsets = [0, 0, 8], sizes = [1, 4, 24], strides = [1, 1, 1]} : vector<1x4x32xf32> to vector<1x4x24xf32>
    %202 = vector.extract_strided_slice %188 {offsets = [0, 0, 0], sizes = [1, 4, 24], strides = [1, 1, 1]} : vector<1x4x32xf32> to vector<1x4x24xf32>
    %203 = arith.subf %201, %202 : vector<1x4x24xf32>
    %204 = math.absf %203 : vector<1x4x24xf32>
    %205 = vector.extract_strided_slice %182 {offsets = [0, 0, 8], sizes = [1, 4, 24], strides = [1, 1, 1]} : vector<1x4x32xf32> to vector<1x4x24xf32>
    %206 = vector.extract_strided_slice %182 {offsets = [0, 0, 0], sizes = [1, 4, 24], strides = [1, 1, 1]} : vector<1x4x32xf32> to vector<1x4x24xf32>
    %207 = arith.mulf %205, %206 : vector<1x4x24xf32>
    %208 = arith.mulf %204, %207 : vector<1x4x24xf32>
    %209 = vector.extract_strided_slice %192 {offsets = [0, 0, 0], sizes = [1, 1, 24], strides = [1, 1, 1]} : vector<1x1x32xi1> to vector<1x1x24xi1>
    %cst_91 = arith.constant 0.000000e+00 : f32
    %210 = vector.shape_cast %209 : vector<1x1x24xi1> to vector<1x1x24xi1>
    %211 = vector.broadcast %210 : vector<1x1x24xi1> to vector<1x4x24xi1>
    %212 = vector.broadcast %cst_91 : f32 to vector<1x4x24xf32>
    %213 = arith.select %211, %208, %212 : vector<1x4x24xi1>, vector<1x4x24xf32>
    %cst_92 = arith.constant dense<0.000000e+00> : vector<1xf32>
    %214 = vector.multi_reduction <add>, %213, %cst_92 [1, 2] : vector<1x4x24xf32> to vector<1xf32>
    %215 = vector.shape_cast %214 : vector<1xf32> to vector<1x1x1xf32>
    %216 = arith.addf %200, %215 : vector<1x1x1xf32>
    %217 = vector.extract_strided_slice %188 {offsets = [0, 1, 0], sizes = [1, 3, 32], strides = [1, 1, 1]} : vector<1x4x32xf32> to vector<1x3x32xf32>
    %218 = vector.extract_strided_slice %188 {offsets = [0, 0, 0], sizes = [1, 3, 32], strides = [1, 1, 1]} : vector<1x4x32xf32> to vector<1x3x32xf32>
    %219 = arith.subf %217, %218 : vector<1x3x32xf32>
    %220 = math.absf %219 : vector<1x3x32xf32>
    %221 = vector.extract_strided_slice %182 {offsets = [0, 1, 0], sizes = [1, 3, 32], strides = [1, 1, 1]} : vector<1x4x32xf32> to vector<1x3x32xf32>
    %222 = vector.extract_strided_slice %182 {offsets = [0, 0, 0], sizes = [1, 3, 32], strides = [1, 1, 1]} : vector<1x4x32xf32> to vector<1x3x32xf32>
    %223 = arith.mulf %221, %222 : vector<1x3x32xf32>
    %224 = arith.mulf %220, %223 : vector<1x3x32xf32>
    %cst_93 = arith.constant 0.000000e+00 : f32
    %225 = vector.shape_cast %192 : vector<1x1x32xi1> to vector<1x1x32xi1>
    %226 = vector.broadcast %225 : vector<1x1x32xi1> to vector<1x3x32xi1>
    %227 = vector.broadcast %cst_93 : f32 to vector<1x3x32xf32>
    %228 = arith.select %226, %224, %227 : vector<1x3x32xi1>, vector<1x3x32xf32>
    %cst_94 = arith.constant dense<0.000000e+00> : vector<1xf32>
    %229 = vector.multi_reduction <add>, %228, %cst_94 [1, 2] : vector<1x3x32xf32> to vector<1xf32>
    %230 = vector.shape_cast %229 : vector<1xf32> to vector<1x1x1xf32>
    %231 = arith.addf %216, %230 : vector<1x1x1xf32>
    %c0_95 = arith.constant 0 : index
    %c0_96 = arith.constant 0 : index
    %c0_97 = arith.constant 0 : index
    %232 = vector.load %arg9[%c0_95, %c0_96, %c0_97] : memref<1x1x1xf32, #tpu.memory_space<vmem>>, vector<1x1x1xf32>
    tpu.vector_store %arg9[%c0_95, %c0_96, %c0_97], %231 {strides = array<i32>} : memref<1x1x1xf32, #tpu.memory_space<vmem>>, vector<1x1x1xf32>,
    return
  }
  func.func @transform_0(%arg0: i32) -> (i32, i32, i32) {
    %c0_i32 = arith.constant 0 : i32
    %c0_i32_0 = arith.constant 0 : i32
    %c0_i32_1 = arith.constant 0 : i32
    return %arg0, %c0_i32, %c0_i32_0 : i32, i32, i32
  }
  func.func @transform_1(%arg0: i32) -> (i32, i32, i32) {
    %c0_i32 = arith.constant 0 : i32
    %c0_i32_0 = arith.constant 0 : i32
    %c0_i32_1 = arith.constant 0 : i32
    return %arg0, %c0_i32, %c0_i32_0 : i32, i32, i32
  }
  func.func @transform_2(%arg0: i32) -> (i32, i32, i32) {
    %c0_i32 = arith.constant 0 : i32
    %c0_i32_0 = arith.constant 0 : i32
    %c0_i32_1 = arith.constant 0 : i32
    return %arg0, %c0_i32, %c0_i32_0 : i32, i32, i32
  }
  func.func @transform_3(%arg0: i32) -> (i32, i32, i32) {
    %c0_i32 = arith.constant 0 : i32
    %c0_i32_0 = arith.constant 0 : i32
    %c0_i32_1 = arith.constant 0 : i32
    return %arg0, %c0_i32, %c0_i32_0 : i32, i32, i32
  }
  func.func @transform_4(%arg0: i32) -> (i32, i32, i32) {
    %c0_i32 = arith.constant 0 : i32
    %c0_i32_0 = arith.constant 0 : i32
    %c0_i32_1 = arith.constant 0 : i32
    return %arg0, %c0_i32, %c0_i32_0 : i32, i32, i32
  }
  func.func @transform_5(%arg0: i32) -> (i32, i32, i32) {
    %c0_i32 = arith.constant 0 : i32
    %c0_i32_0 = arith.constant 0 : i32
    %c0_i32_1 = arith.constant 0 : i32
    return %arg0, %c0_i32, %c0_i32_0 : i32, i32, i32
  }
  func.func @transform_6(%arg0: i32) -> (i32, i32, i32) {
    %c0_i32 = arith.constant 0 : i32
    %c0_i32_0 = arith.constant 0 : i32
    %c0_i32_1 = arith.constant 0 : i32
    return %arg0, %c0_i32, %c0_i32_0 : i32, i32, i32
  }
  func.func @transform_7(%arg0: i32) -> (i32, i32, i32) {
    %c0_i32 = arith.constant 0 : i32
    %c0_i32_0 = arith.constant 0 : i32
    %c0_i32_1 = arith.constant 0 : i32
    return %arg0, %c0_i32, %c0_i32_0 : i32, i32, i32
  }
  func.func @transform_8(%arg0: i32) -> (i32, i32, i32) {
    %c0_i32 = arith.constant 0 : i32
    %c0_i32_0 = arith.constant 0 : i32
    %c0_i32_1 = arith.constant 0 : i32
    return %arg0, %c0_i32, %c0_i32_0 : i32, i32, i32
  }
  func.func @transform_9(%arg0: i32) -> (i32, i32, i32) {
    %c0_i32 = arith.constant 0 : i32
    %c0_i32_0 = arith.constant 0 : i32
    %c0_i32_1 = arith.constant 0 : i32
    return %arg0, %c0_i32, %c0_i32_0 : i32, i32, i32
  }
  func.func @transform_10(%arg0: i32) -> (i32, i32, i32) {
    %c0_i32 = arith.constant 0 : i32
    %c0_i32_0 = arith.constant 0 : i32
    %c0_i32_1 = arith.constant 0 : i32
    return %arg0, %c0_i32, %c0_i32_0 : i32, i32, i32
  }
  func.func @transform_11(%arg0: i32) -> (i32, i32, i32) {
    %c0_i32 = arith.constant 0 : i32
    %c0_i32_0 = arith.constant 0 : i32
    %c0_i32_1 = arith.constant 0 : i32
    return %arg0, %c0_i32, %c0_i32_0 : i32, i32, i32
  }
}

</mosaic_0001>

<llo_original>
// kernel: tpu_custom_call.1
$region0: #{tpu_custom_call.1}
  #allocation0 [shape = 'u32[]', space=smem, size = 0x4, offset = 0x4, fixed_abs, tag = 'smem constant byte address 0x4 - core index']
  #allocation1 [shape = 'u32[144,128]{1,0:T(1,128)}', space=vmem, size = 0x12000, scoped, tag = 'internal scratch']
  %s0 = inlined_call_operand.hbm [shape: f32[2,32,32], index: 0, kind: input, shape index: {}]
  %s1 = inlined_call_operand.hbm [shape: f32[2,32,32], index: 1, kind: input, shape index: {}]
  %s2 = inlined_call_operand.hbm [shape: f32[2,32,32], index: 2, kind: input, shape index: {}]
  %s3 = inlined_call_operand.vmem [shape: f32[2,1,1], index: 3, kind: output, shape index: {0}]
  %s4 = inlined_call_operand.vmem [shape: f32[2,1,1], index: 4, kind: output, shape index: {1}]
  %s5 = inlined_call_operand.vmem [shape: f32[2,1,1], index: 5, kind: output, shape index: {2}]
  %s6 = inlined_call_operand.vmem [shape: f32[2,1,1], index: 6, kind: output, shape index: {3}]
  %s7 = inlined_call_operand.vmem [shape: f32[2,1,1], index: 7, kind: output, shape index: {4}]
  %s8 = inlined_call_operand.vmem [shape: f32[2,1,1], index: 8, kind: output, shape index: {5}]
  %s9 = inlined_call_operand.vmem [shape: f32[2,1,1], index: 9, kind: output, shape index: {6}]
  %s10 = inlined_call_operand.vmem [shape: f32[2,1,1], index: 10, kind: output, shape index: {7}]
  %s11 = inlined_call_operand.vmem [shape: f32[2,1,1], index: 11, kind: output, shape index: {8}]
  %12 = xla_tuple %s3, %s4, %s5, %s6, %s7, %s8, %s9, %s10, %s11
  %s13 = sld [smem:[#allocation0]]
  $region121: #{tpu_custom_call.1} parent=0
    _
  %s15 = ssub.s32 1, %s13
  %s16 = scalar_select 0, %s15, %s13
  $region1: #{tpu_custom_call.1} parent=0
    #allocation2 [shape = 'u8[32768]{0}', space=vmem, size = 0x8000, scoped, tag = 'input window, operand 0']
    #allocation3 [shape = 's32[2]{0}', space=sflag, size = 0x8, scoped, tag = 'scoped memory for tpu_custom_call.1']
    #allocation4 [shape = 'u8[32768]{0}', space=vmem, size = 0x8000, scoped, tag = 'input window, operand 1']
    #allocation5 [shape = 's32[2]{0}', space=sflag, size = 0x8, scoped, tag = 'scoped memory for tpu_custom_call.1']
    #allocation6 [shape = 'u8[32768]{0}', space=vmem, size = 0x8000, scoped, tag = 'input window, operand 2']
    %17 = vsyncpa [#allocation3], 0
    %s18 = scalar_lea.sflag [#allocation3], 1
    %19 = vsyncpa %s18, 0
    %20 = vsyncpa [#allocation5], 0
    %s21 = scalar_lea.sflag [#allocation5], 1
    %22 = vsyncpa %s21, 0
    loop: start=0, step=1, limit=4
    $region2: #{tpu_custom_call.1} parent=1 // loop_pre_header
      _
    $region3: #{tpu_custom_call.1} parent=1 // loop_header
      %s24 = sphi 0, %s28
      %p25 = scmp.ge.s32.totalorder %s24, 4
      %s34 = sphi 0, %s36
      %s37 = sphi 0, %s34
      %s38 = sphi 0, %s37
      %s54 = sphi 0, %s38
      %s60 = sphi 0, %s62
      %s63 = sphi 0, %s60
      %s64 = sphi 0, %s63
      %s80 = sphi 0, %s64
      %s86 = sphi 0, %s88
      %s89 = sphi 0, %s86
      %s90 = sphi 0, %s89
      %s106 = sphi 0, %s90
      %s112 = sphi 0, %s114
      %s115 = sphi 0, %s112
      %s116 = sphi 0, %s115
      %s132 = sphi 0, %s116
      %s138 = sphi 0, %s140
      %s141 = sphi 0, %s138
      %s142 = sphi 0, %s141
      %s158 = sphi 0, %s142
      %s164 = sphi 0, %s166
      %s167 = sphi 0, %s164
      %s168 = sphi 0, %s167
      %s184 = sphi 0, %s168
      %s190 = sphi 0, %s192
      %s193 = sphi 0, %s190
      %s194 = sphi 0, %s193
      %s210 = sphi 0, %s194
      %s216 = sphi 0, %s218
      %s219 = sphi 0, %s216
      %s220 = sphi 0, %s219
      %s236 = sphi 0, %s220
      %s242 = sphi 0, %s244
      %s245 = sphi 0, %s242
      %s246 = sphi 0, %s245
      %s262 = sphi 0, %s246
      %s268 = sphi 0, %s270
      %s271 = sphi 0, %s268
      %s272 = sphi 0, %s271
      %s288 = sphi 0, %s272
      %s294 = sphi 0, %s296
      %s297 = sphi 0, %s294
      %s298 = sphi 0, %s297
      %s314 = sphi 0, %s298
      %s320 = sphi 0, %s322
      %s323 = sphi 0, %s320
      %s324 = sphi 0, %s323
      %s340 = sphi 0, %s324
    $region4: #{tpu_custom_call.1} parent=1 // loop_header_branch
      %27 = sbr.rel (%p25) target = $region8
    $region5: #{tpu_custom_call.1} parent=1 // loop_body
      %s29 = ssub.s32 %s24, 1
      %s30 = ssub.s32 %s24, 2
      %s31 = sadd.s32 %s24, 1
      %s32 = ssub.s32 %s24, %s31
      %p33 = scmp.eq.s32.totalorder %s32, 0
      %s35 = sadd.s32 %s34, 1
      %s36 = scalar_select %p33, %s34, %s35
      %p39 = pneg %p33
      %p40 = scmp.eq.s32.totalorder %s24, 1
      %p41 = por %p39, %p40
      %p42 = scmp.ne.s32.totalorder %s34, %s37
      %p43 = scmp.eq.s32.totalorder %s24, 0
      %p44 = por %p42, %p43
      %p45 = scmp.ne.s32.totalorder %s34, %s37
      %p46 = scmp.eq.s32.totalorder %s29, 1
      %p47 = por %p45, %p46
      %p48 = scmp.ne.s32.totalorder %s37, %s38
      %p49 = scmp.eq.s32.totalorder %s29, 0
      %p50 = por %p48, %p49
      %p51 = scmp.ne.s32.totalorder %s37, %s38
      %p52 = scmp.eq.s32.totalorder %s30, 1
      %p53 = por %p51, %p52
      %p55 = scmp.ne.s32.totalorder %s38, %s54
      %p56 = scmp.eq.s32.totalorder %s30, 0
      %p57 = por %p55, %p56
      %s58 = ssub.s32 %s24, %s31
      %p59 = scmp.eq.s32.totalorder %s58, 0
      %s61 = sadd.s32 %s60, 1
      %s62 = scalar_select %p59, %s60, %s61
      %p65 = pneg %p59
      %p66 = scmp.eq.s32.totalorder %s24, 1
      %p67 = por %p65, %p66
      %p68 = scmp.ne.s32.totalorder %s60, %s63
      %p69 = scmp.eq.s32.totalorder %s24, 0
      %p70 = por %p68, %p69
      %p71 = scmp.ne.s32.totalorder %s60, %s63
      %p72 = scmp.eq.s32.totalorder %s29, 1
      %p73 = por %p71, %p72
      %p74 = scmp.ne.s32.totalorder %s63, %s64
      %p75 = scmp.eq.s32.totalorder %s29, 0
      %p76 = por %p74, %p75
      %p77 = scmp.ne.s32.totalorder %s63, %s64
      %p78 = scmp.eq.s32.totalorder %s30, 1
      %p79 = por %p77, %p78
      %p81 = scmp.ne.s32.totalorder %s64, %s80
      %p82 = scmp.eq.s32.totalorder %s30, 0
      %p83 = por %p81, %p82
      %s84 = ssub.s32 %s24, %s31
      %p85 = scmp.eq.s32.totalorder %s84, 0
      %s87 = sadd.s32 %s86, 1
      %s88 = scalar_select %p85, %s86, %s87
      %p91 = pneg %p85
      %p92 = scmp.eq.s32.totalorder %s24, 1
      %p93 = por %p91, %p92
      %p94 = scmp.ne.s32.totalorder %s86, %s89
      %p95 = scmp.eq.s32.totalorder %s24, 0
      %p96 = por %p94, %p95
      %p97 = scmp.ne.s32.totalorder %s86, %s89
      %p98 = scmp.eq.s32.totalorder %s29, 1
      %p99 = por %p97, %p98
      %p100 = scmp.ne.s32.totalorder %s89, %s90
      %p101 = scmp.eq.s32.totalorder %s29, 0
      %p102 = por %p100, %p101
      %p103 = scmp.ne.s32.totalorder %s89, %s90
      %p104 = scmp.eq.s32.totalorder %s30, 1
      %p105 = por %p103, %p104
      %p107 = scmp.ne.s32.totalorder %s90, %s106
      %p108 = scmp.eq.s32.totalorder %s30, 0
      %p109 = por %p107, %p108
      %s110 = ssub.s32 %s24, %s31
      %p111 = scmp.eq.s32.totalorder %s110, 0
      %s113 = sadd.s32 %s112, 1
      %s114 = scalar_select %p111, %s112, %s113
      %p117 = pneg %p111
      %p118 = scmp.eq.s32.totalorder %s24, 1
      %p119 = por %p117, %p118
      %p120 = scmp.ne.s32.totalorder %s112, %s115
      %p121 = scmp.eq.s32.totalorder %s24, 0
      %p122 = por %p120, %p121
      %p123 = scmp.ne.s32.totalorder %s112, %s115
      %p124 = scmp.eq.s32.totalorder %s29, 1
      %p125 = por %p123, %p124
      %p126 = scmp.ne.s32.totalorder %s115, %s116
      %p127 = scmp.eq.s32.totalorder %s29, 0
      %p128 = por %p126, %p127
      %p129 = scmp.ne.s32.totalorder %s115, %s116
      %p130 = scmp.eq.s32.totalorder %s30, 1
      %p131 = por %p129, %p130
      %p133 = scmp.ne.s32.totalorder %s116, %s132
      %p134 = scmp.eq.s32.totalorder %s30, 0
      %p135 = por %p133, %p134
      %s136 = ssub.s32 %s24, %s31
      %p137 = scmp.eq.s32.totalorder %s136, 0
      %s139 = sadd.s32 %s138, 1
      %s140 = scalar_select %p137, %s138, %s139
      %p143 = pneg %p137
      %p144 = scmp.eq.s32.totalorder %s24, 1
      %p145 = por %p143, %p144
      %p146 = scmp.ne.s32.totalorder %s138, %s141
      %p147 = scmp.eq.s32.totalorder %s24, 0
      %p148 = por %p146, %p147
      %p149 = scmp.ne.s32.totalorder %s138, %s141
      %p150 = scmp.eq.s32.totalorder %s29, 1
      %p151 = por %p149, %p150
      %p152 = scmp.ne.s32.totalorder %s141, %s142
      %p153 = scmp.eq.s32.totalorder %s29, 0
      %p154 = por %p152, %p153
      %p155 = scmp.ne.s32.totalorder %s141, %s142
      %p156 = scmp.eq.s32.totalorder %s30, 1
      %p157 = por %p155, %p156
      %p159 = scmp.ne.s32.totalorder %s142, %s158
      %p160 = scmp.eq.s32.totalorder %s30, 0
      %p161 = por %p159, %p160
      %s162 = ssub.s32 %s24, %s31
      %p163 = scmp.eq.s32.totalorder %s162, 0
      %s165 = sadd.s32 %s164, 1
      %s166 = scalar_select %p163, %s164, %s165
      %p169 = pneg %p163
      %p170 = scmp.eq.s32.totalorder %s24, 1
      %p171 = por %p169, %p170
      %p172 = scmp.ne.s32.totalorder %s164, %s167
      %p173 = scmp.eq.s32.totalorder %s24, 0
      %p174 = por %p172, %p173
      %p175 = scmp.ne.s32.totalorder %s164, %s167
      %p176 = scmp.eq.s32.totalorder %s29, 1
      %p177 = por %p175, %p176
      %p178 = scmp.ne.s32.totalorder %s167, %s168
      %p179 = scmp.eq.s32.totalorder %s29, 0
      %p180 = por %p178, %p179
      %p181 = scmp.ne.s32.totalorder %s167, %s168
      %p182 = scmp.eq.s32.totalorder %s30, 1
      %p183 = por %p181, %p182
      %p185 = scmp.ne.s32.totalorder %s168, %s184
      %p186 = scmp.eq.s32.totalorder %s30, 0
      %p187 = por %p185, %p186
      %s188 = ssub.s32 %s24, %s31
      %p189 = scmp.eq.s32.totalorder %s188, 0
      %s191 = sadd.s32 %s190, 1
      %s192 = scalar_select %p189, %s190, %s191
      %p195 = pneg %p189
      %p196 = scmp.eq.s32.totalorder %s24, 1
      %p197 = por %p195, %p196
      %p198 = scmp.ne.s32.totalorder %s190, %s193
      %p199 = scmp.eq.s32.totalorder %s24, 0
      %p200 = por %p198, %p199
      %p201 = scmp.ne.s32.totalorder %s190, %s193
      %p202 = scmp.eq.s32.totalorder %s29, 1
      %p203 = por %p201, %p202
      %p204 = scmp.ne.s32.totalorder %s193, %s194
      %p205 = scmp.eq.s32.totalorder %s29, 0
      %p206 = por %p204, %p205
      %p207 = scmp.ne.s32.totalorder %s193, %s194
      %p208 = scmp.eq.s32.totalorder %s30, 1
      %p209 = por %p207, %p208
      %p211 = scmp.ne.s32.totalorder %s194, %s210
      %p212 = scmp.eq.s32.totalorder %s30, 0
      %p213 = por %p211, %p212
      %s214 = ssub.s32 %s24, %s31
      %p215 = scmp.eq.s32.totalorder %s214, 0
      %s217 = sadd.s32 %s216, 1
      %s218 = scalar_select %p215, %s216, %s217
      %p221 = pneg %p215
      %p222 = scmp.eq.s32.totalorder %s24, 1
      %p223 = por %p221, %p222
      %p224 = scmp.ne.s32.totalorder %s216, %s219
      %p225 = scmp.eq.s32.totalorder %s24, 0
      %p226 = por %p224, %p225
      %p227 = scmp.ne.s32.totalorder %s216, %s219
      %p228 = scmp.eq.s32.totalorder %s29, 1
      %p229 = por %p227, %p228
      %p230 = scmp.ne.s32.totalorder %s219, %s220
      %p231 = scmp.eq.s32.totalorder %s29, 0
      %p232 = por %p230, %p231
      %p233 = scmp.ne.s32.totalorder %s219, %s220
      %p234 = scmp.eq.s32.totalorder %s30, 1
      %p235 = por %p233, %p234
      %p237 = scmp.ne.s32.totalorder %s220, %s236
      %p238 = scmp.eq.s32.totalorder %s30, 0
      %p239 = por %p237, %p238
      %s240 = ssub.s32 %s24, %s31
      %p241 = scmp.eq.s32.totalorder %s240, 0
      %s243 = sadd.s32 %s242, 1
      %s244 = scalar_select %p241, %s242, %s243
      %p247 = pneg %p241
      %p248 = scmp.eq.s32.totalorder %s24, 1
      %p249 = por %p247, %p248
      %p250 = scmp.ne.s32.totalorder %s242, %s245
      %p251 = scmp.eq.s32.totalorder %s24, 0
      %p252 = por %p250, %p251
      %p253 = scmp.ne.s32.totalorder %s242, %s245
      %p254 = scmp.eq.s32.totalorder %s29, 1
      %p255 = por %p253, %p254
      %p256 = scmp.ne.s32.totalorder %s245, %s246
      %p257 = scmp.eq.s32.totalorder %s29, 0
      %p258 = por %p256, %p257
      %p259 = scmp.ne.s32.totalorder %s245, %s246
      %p260 = scmp.eq.s32.totalorder %s30, 1
      %p261 = por %p259, %p260
      %p263 = scmp.ne.s32.totalorder %s246, %s262
      %p264 = scmp.eq.s32.totalorder %s30, 0
      %p265 = por %p263, %p264
      %s266 = ssub.s32 %s24, %s31
      %p267 = scmp.eq.s32.totalorder %s266, 0
      %s269 = sadd.s32 %s268, 1
      %s270 = scalar_select %p267, %s268, %s269
      %p273 = pneg %p267
      %p274 = scmp.eq.s32.totalorder %s24, 1
      %p275 = por %p273, %p274
      %p276 = scmp.ne.s32.totalorder %s268, %s271
      %p277 = scmp.eq.s32.totalorder %s24, 0
      %p278 = por %p276, %p277
      %p279 = scmp.ne.s32.totalorder %s268, %s271
      %p280 = scmp.eq.s32.totalorder %s29, 1
      %p281 = por %p279, %p280
      %p282 = scmp.ne.s32.totalorder %s271, %s272
      %p283 = scmp.eq.s32.totalorder %s29, 0
      %p284 = por %p282, %p283
      %p285 = scmp.ne.s32.totalorder %s271, %s272
      %p286 = scmp.eq.s32.totalorder %s30, 1
      %p287 = por %p285, %p286
      %p289 = scmp.ne.s32.totalorder %s272, %s288
      %p290 = scmp.eq.s32.totalorder %s30, 0
      %p291 = por %p289, %p290
      %s292 = ssub.s32 %s24, %s31
      %p293 = scmp.eq.s32.totalorder %s292, 0
      %s295 = sadd.s32 %s294, 1
      %s296 = scalar_select %p293, %s294, %s295
      %p299 = pneg %p293
      %p300 = scmp.eq.s32.totalorder %s24, 1
      %p301 = por %p299, %p300
      %p302 = scmp.ne.s32.totalorder %s294, %s297
      %p303 = scmp.eq.s32.totalorder %s24, 0
      %p304 = por %p302, %p303
      %p305 = scmp.ne.s32.totalorder %s294, %s297
      %p306 = scmp.eq.s32.totalorder %s29, 1
      %p307 = por %p305, %p306
      %p308 = scmp.ne.s32.totalorder %s297, %s298
      %p309 = scmp.eq.s32.totalorder %s29, 0
      %p310 = por %p308, %p309
      %p311 = scmp.ne.s32.totalorder %s297, %s298
      %p312 = scmp.eq.s32.totalorder %s30, 1
      %p313 = por %p311, %p312
      %p315 = scmp.ne.s32.totalorder %s298, %s314
      %p316 = scmp.eq.s32.totalorder %s30, 0
      %p317 = por %p315, %p316
      %s318 = ssub.s32 %s24, %s31
      %p319 = scmp.eq.s32.totalorder %s318, 0
      %s321 = sadd.s32 %s320, 1
      %s322 = scalar_select %p319, %s320, %s321
      %p325 = pneg %p319
      %p326 = scmp.eq.s32.totalorder %s24, 1
      %p327 = por %p325, %p326
      %p328 = scmp.ne.s32.totalorder %s320, %s323
      %p329 = scmp.eq.s32.totalorder %s24, 0
      %p330 = por %p328, %p329
      %p331 = scmp.ne.s32.totalorder %s320, %s323
      %p332 = scmp.eq.s32.totalorder %s29, 1
      %p333 = por %p331, %p332
      %p334 = scmp.ne.s32.totalorder %s323, %s324
      %p335 = scmp.eq.s32.totalorder %s29, 0
      %p336 = por %p334, %p335
      %p337 = scmp.ne.s32.totalorder %s323, %s324
      %p338 = scmp.eq.s32.totalorder %s30, 1
      %p339 = por %p337, %p338
      %p341 = scmp.ne.s32.totalorder %s324, %s340
      %p342 = scmp.eq.s32.totalorder %s30, 0
      %p343 = por %p341, %p342
      %p344 = scmp.le.s32.totalorder 1, %s24
      %p345 = scmp.lt.s32.totalorder %s24, 3
      %p346 = pnand %p344, %p345
      %p347 = pneg %p346
      // Predicated region
      $region9: #{tpu_custom_call.1} parent=5 // pred_check
        _
      $region10: #{tpu_custom_call.1} parent=5 // pred_check_branch
        %349 = sbr.rel (%p346) target = $region12
      $region11: #{tpu_custom_call.1} parent=5 // pred_region
        %s350 = ssub.s32 %s24, 1
      $region12: #{tpu_custom_call.1} parent=5 // pred_fallthru
        _
      %p351 = scmp.lt.s32.totalorder %s24, 2
      // Predicated region
      $region13: #{tpu_custom_call.1} parent=5 // pred_check
        %p352 = pneg %p351
      $region14: #{tpu_custom_call.1} parent=5 // pred_check_branch
        %354 = sbr.rel (%p352) target = $region16
      $region15: #{tpu_custom_call.1} parent=5 // pred_region
        // Predicated region
        $region17: #{tpu_custom_call.1} parent=15 // pred_check
          %p355 = pneg %p44
        $region18: #{tpu_custom_call.1} parent=15 // pred_check_branch
          %357 = sbr.rel (%p355) target = $region20
        $region19: #{tpu_custom_call.1} parent=15 // pred_region
          %s358 = sand.u32 %s34, 1
          %s359 = scalar_lea.sflag [#allocation3], %s358
          %s360 = sand.u32 %s34, 1
          %s361 = smul.addr %s360, 32
          %s362 = scalar_lea.vmem [#allocation2], %s361
          %s364 = ssub.s32 512, 512
          %365 = vsyncadd %s359, %s364
          %s366 = smul.addr %s24, 4
          %s367 = smul.addr %s366, 128
          %s368 = scalar_lea.hbm %s0, %s367
          %s369 = sshll.u32 %s362, 4
          %s370 = int_to_ptr.vmem [resolvable:$true] %s369
          %375 = dma.hbm_to_vmem [thread:$0]  %s368, 512, %s370, %s359, 128, 128, 8
        $region20: #{tpu_custom_call.1} parent=15 // pred_fallthru
          _
        // Predicated region
        $region21: #{tpu_custom_call.1} parent=15 // pred_check
          %p376 = pneg %p70
        $region22: #{tpu_custom_call.1} parent=15 // pred_check_branch
          %378 = sbr.rel (%p376) target = $region24
        $region23: #{tpu_custom_call.1} parent=15 // pred_region
          %s379 = sand.u32 %s24, 1
          %s380 = scalar_lea.sflag [#allocation5], %s379
          %s381 = sand.u32 %s60, 1
          %s382 = smul.addr %s381, 32
          %s383 = scalar_lea.vmem [#allocation4], %s382
          %s385 = ssub.s32 512, 512
          %386 = vsyncadd %s380, %s385
          %s387 = smul.addr %s24, 4
          %s388 = smul.addr %s387, 128
          %s389 = scalar_lea.hbm %s1, %s388
          %s390 = sshll.u32 %s383, 4
          %s391 = int_to_ptr.vmem [resolvable:$true] %s390
          %396 = dma.hbm_to_vmem [thread:$0]  %s389, 512, %s391, %s380, 128, 128, 8
        $region24: #{tpu_custom_call.1} parent=15 // pred_fallthru
          _
        // Predicated region
        $region25: #{tpu_custom_call.1} parent=15 // pred_check
          %p397 = pneg %p96
        $region26: #{tpu_custom_call.1} parent=15 // pred_check_branch
          %399 = sbr.rel (%p397) target = $region28
        $region27: #{tpu_custom_call.1} parent=15 // pred_region
          %s400 = sand.u32 %s24, 1
          %s401 = scalar_lea.sflag [#allocation5], %s400
          %s402 = sand.u32 %s86, 1
          %s403 = smul.addr %s402, 32
          %s404 = scalar_lea.vmem [#allocation6], %s403
          %s406 = ssub.s32 512, 512
          %407 = vsyncadd %s401, %s406
          %s408 = smul.addr %s24, 4
          %s409 = smul.addr %s408, 128
          %s410 = scalar_lea.hbm %s2, %s409
          %s411 = sshll.u32 %s404, 4
          %s412 = int_to_ptr.vmem [resolvable:$true] %s411
          %417 = dma.hbm_to_vmem [thread:$0]  %s410, 512, %s412, %s401, 128, 128, 8
        $region28: #{tpu_custom_call.1} parent=15 // pred_fallthru
          _
      $region16: #{tpu_custom_call.1} parent=5 // pred_fallthru
        _
      %p418 = scmp.le.s32.totalorder 1, %s24
      %p419 = scmp.lt.s32.totalorder %s24, 3
      %p420 = pnand %p418, %p419
      %p421 = pneg %p420
      // Predicated region
      $region29: #{tpu_custom_call.1} parent=5 // pred_check
        _
      $region30: #{tpu_custom_call.1} parent=5 // pred_check_branch
        %423 = sbr.rel (%p420) target = $region32
      $region31: #{tpu_custom_call.1} parent=5 // pred_region
        %s424 = ssub.s32 %s24, 1
        %s425 = sand.u32 %s37, 1
        %s426 = scalar_lea.sflag [#allocation3], %s425
        %s427 = sand.u32 %s37, 1
        %s428 = smul.addr %s427, 32
        %s429 = scalar_lea.vmem [#allocation2], %s428
        // Predicated region
        $region33: #{tpu_custom_call.1} parent=31 // pred_check
          %p430 = pneg %p50
        $region34: #{tpu_custom_call.1} parent=31 // pred_check_branch
          %432 = sbr.rel (%p430) target = $region36
        $region35: #{tpu_custom_call.1} parent=31 // pred_region
          %433 = dma.done %s426, 512
        $region36: #{tpu_custom_call.1} parent=31 // pred_fallthru
          _
        %s434 = sand.u32 %s29, 1
        %s435 = scalar_lea.sflag [#allocation5], %s434
        %s436 = sand.u32 %s63, 1
        %s437 = smul.addr %s436, 32
        %s438 = scalar_lea.vmem [#allocation4], %s437
        // Predicated region
        $region37: #{tpu_custom_call.1} parent=31 // pred_check
          %p439 = pneg %p76
        $region38: #{tpu_custom_call.1} parent=31 // pred_check_branch
          %441 = sbr.rel (%p439) target = $region40
        $region39: #{tpu_custom_call.1} parent=31 // pred_region
          %442 = dma.done %s435, 512
        $region40: #{tpu_custom_call.1} parent=31 // pred_fallthru
          _
        %s443 = sand.u32 %s29, 1
        %s444 = scalar_lea.sflag [#allocation5], %s443
        %s445 = sand.u32 %s89, 1
        %s446 = smul.addr %s445, 32
        %s447 = scalar_lea.vmem [#allocation6], %s446
        // Predicated region
        $region41: #{tpu_custom_call.1} parent=31 // pred_check
          %p448 = pneg %p102
        $region42: #{tpu_custom_call.1} parent=31 // pred_check_branch
          %450 = sbr.rel (%p448) target = $region44
        $region43: #{tpu_custom_call.1} parent=31 // pred_region
          %451 = dma.done %s444, 512
        $region44: #{tpu_custom_call.1} parent=31 // pred_fallthru
          _
        %s452 = sand.u32 %s37, 1
        %s453 = scalar_lea.sflag [#allocation3], %s452
        %s454 = sand.u32 %s37, 1
        %s455 = smul.addr %s454, 32
        %s456 = scalar_lea.vmem [#allocation2], %s455
        %p457 = pneg %p50
        %p458 = pneg %p47
        %s459 = sand.u32 %s29, 1
        %s460 = scalar_lea.sflag [#allocation5], %s459
        %s461 = sand.u32 %s63, 1
        %s462 = smul.addr %s461, 32
        %s463 = scalar_lea.vmem [#allocation4], %s462
        %p464 = pneg %p76
        %p465 = pneg %p73
        %s466 = sand.u32 %s29, 1
        %s467 = scalar_lea.sflag [#allocation5], %s466
        %s468 = sand.u32 %s89, 1
        %s469 = smul.addr %s468, 32
        %s470 = scalar_lea.vmem [#allocation6], %s469
        %p471 = pneg %p102
        %p472 = pneg %p99
        %p473 = pneg %p128
        %p474 = pneg %p125
        %p475 = scmp.lt.s32.totalorder %s29, 1
        %s476 = scalar_select %p475, %s29, 1
        %s477 = scalar_lea.vmem %s3, %s476
        %p478 = pneg %p154
        %p479 = pneg %p151
        %p480 = scmp.lt.s32.totalorder %s29, 1
        %s481 = scalar_select %p480, %s29, 1
        %s482 = scalar_lea.vmem %s4, %s481
        %p483 = pneg %p180
        %p484 = pneg %p177
        %p485 = scmp.lt.s32.totalorder %s29, 1
        %s486 = scalar_select %p485, %s29, 1
        %s487 = scalar_lea.vmem %s5, %s486
        %p488 = pneg %p206
        %p489 = pneg %p203
        %p490 = scmp.lt.s32.totalorder %s29, 1
        %s491 = scalar_select %p490, %s29, 1
        %s492 = scalar_lea.vmem %s6, %s491
        %p493 = pneg %p232
        %p494 = pneg %p229
        %p495 = scmp.lt.s32.totalorder %s29, 1
        %s496 = scalar_select %p495, %s29, 1
        %s497 = scalar_lea.vmem %s7, %s496
        %p498 = pneg %p258
        %p499 = pneg %p255
        %p500 = scmp.lt.s32.totalorder %s29, 1
        %s501 = scalar_select %p500, %s29, 1
        %s502 = scalar_lea.vmem %s8, %s501
        %p503 = pneg %p284
        %p504 = pneg %p281
        %p505 = scmp.lt.s32.totalorder %s29, 1
        %s506 = scalar_select %p505, %s29, 1
        %s507 = scalar_lea.vmem %s9, %s506
        %p508 = pneg %p310
        %p509 = pneg %p307
        %p510 = scmp.lt.s32.totalorder %s29, 1
        %s511 = scalar_select %p510, %s29, 1
        %s512 = scalar_lea.vmem %s10, %s511
        %p513 = pneg %p336
        %p514 = pneg %p333
        %p515 = scmp.lt.s32.totalorder %s29, 1
        %s516 = scalar_select %p515, %s29, 1
        %s517 = scalar_lea.vmem %s11, %s516
        %p518 = scmp.lt.s32.totalorder %s29, 1
        %s519 = scalar_select %p518, %s29, 1
        %s520 = scalar_lea.vmem %s3, %s519
        %p521 = scmp.lt.s32.totalorder %s29, 1
        %s522 = scalar_select %p521, %s29, 1
        %s523 = scalar_lea.vmem %s4, %s522
        %p524 = scmp.lt.s32.totalorder %s29, 1
        %s525 = scalar_select %p524, %s29, 1
        %s526 = scalar_lea.vmem %s5, %s525
        %p527 = scmp.lt.s32.totalorder %s29, 1
        %s528 = scalar_select %p527, %s29, 1
        %s529 = scalar_lea.vmem %s6, %s528
        %p530 = scmp.lt.s32.totalorder %s29, 1
        %s531 = scalar_select %p530, %s29, 1
        %s532 = scalar_lea.vmem %s7, %s531
        %p533 = scmp.lt.s32.totalorder %s29, 1
        %s534 = scalar_select %p533, %s29, 1
        %s535 = scalar_lea.vmem %s8, %s534
        %p536 = scmp.lt.s32.totalorder %s29, 1
        %s537 = scalar_select %p536, %s29, 1
        %s538 = scalar_lea.vmem %s9, %s537
        %p539 = scmp.lt.s32.totalorder %s29, 1
        %s540 = scalar_select %p539, %s29, 1
        %s541 = scalar_lea.vmem %s10, %s540
        %p542 = scmp.lt.s32.totalorder %s29, 1
        %s543 = scalar_select %p542, %s29, 1
        %s544 = scalar_lea.vmem %s11, %s543
        %v545 = vld [vmem:[%s429] sm:$0xff]
        %v546 = vld [vmem:[%s429 + $0x8] sm:$0xff]
        %v547 = vld [vmem:[%s429 + $0x10] sm:$0xff]
        %v548 = vld [vmem:[%s429 + $0x18] sm:$0xff]
        %v549 = vld [vmem:[%s438] sm:$0xff]
        %v550 = vld [vmem:[%s438 + $0x8] sm:$0xff]
        %v551 = vld [vmem:[%s438 + $0x10] sm:$0xff]
        %v552 = vld [vmem:[%s438 + $0x18] sm:$0xff]
        %v553 = vld [vmem:[%s447] sm:$0xff]
        %v554 = vld [vmem:[%s447 + $0x8] sm:$0xff]
        %v555 = vld [vmem:[%s447 + $0x10] sm:$0xff]
        %v556 = vld [vmem:[%s447 + $0x18] sm:$0xff]
        %v557 = vmul.f32 %v553, %v545
        %v558 = vmul.f32 %v554, %v546
        %v559 = vmul.f32 %v555, %v547
        %v560 = vmul.f32 %v556, %v548
        %v561 = vmul.f32 %v557, %v545
        %v562 = vmul.f32 %v558, %v546
        %v563 = vmul.f32 %v559, %v547
        %v564 = vmul.f32 %v560, %v548
        %vm565 = vcmask 261120
        %v566 = vsel %vm565, %v561, 0.0
        %v567 = vsel %vm565, %v562, 0.0
        %v568 = vadd.f32 %v566, %v567
        %v569 = vsel %vm565, %v563, 0.0
        %v570 = vadd.f32 %v568, %v569
        %v571 = vsel %vm565, %v564, 0.0
        %v572 = vadd.f32 %v570, %v571
        %573 = vadd.xlane.f32.xlu0 %v572
        %v574 = vpop.xlane.xlu0 %573
        %v575 = vrot.slane %v574, 4
        %v576 = vadd.f32 %v574, %v575
        %v577 = vrot.slane %v576, 2
        %v578 = vadd.f32 %v576, %v577
        %v579 = vrot.slane %v578, 1
        %v580 = vadd.f32 %v578, %v579
        %v581 = vsel %vm565, %v557, 0.0
        %v582 = vsel %vm565, %v558, 0.0
        %v583 = vadd.f32 %v581, %v582
        %v584 = vsel %vm565, %v559, 0.0
        %v585 = vadd.f32 %v583, %v584
        %v586 = vsel %vm565, %v560, 0.0
        %v587 = vadd.f32 %v585, %v586
        %588 = vadd.xlane.f32.xlu0 %v587
        %v589 = vpop.xlane.xlu0 %588
        %v590 = vrot.slane %v589, 4
        %v591 = vadd.f32 %v589, %v590
        %v592 = vrot.slane %v591, 2
        %v593 = vadd.f32 %v591, %v592
        %v594 = vrot.slane %v593, 1
        %v595 = vadd.f32 %v593, %v594
        %v596 = vsel %vm565, %v553, 0.0
        %v597 = vsel %vm565, %v554, 0.0
        %v598 = vadd.f32 %v596, %v597
        %v599 = vsel %vm565, %v555, 0.0
        %v600 = vadd.f32 %v598, %v599
        %v601 = vsel %vm565, %v556, 0.0
        %v602 = vadd.f32 %v600, %v601
        %603 = vadd.xlane.f32.xlu0 %v602
        %v604 = vpop.xlane.xlu0 %603
        %v605 = vrot.slane %v604, 4
        %v606 = vadd.f32 %v604, %v605
        %v607 = vrot.slane %v606, 2
        %v608 = vadd.f32 %v606, %v607
        %v609 = vrot.slane %v608, 1
        %v610 = vadd.f32 %v608, %v609
        %v611 = vmul.f32 %v557, %v549
        %v612 = vmul.f32 %v558, %v550
        %v613 = vmul.f32 %v559, %v551
        %v614 = vmul.f32 %v560, %v552
        %v615 = vsel %vm565, %v611, 0.0
        %v616 = vsel %vm565, %v612, 0.0
        %v617 = vadd.f32 %v615, %v616
        %v618 = vsel %vm565, %v613, 0.0
        %v619 = vadd.f32 %v617, %v618
        %v620 = vsel %vm565, %v614, 0.0
        %v621 = vadd.f32 %v619, %v620
        %622 = vadd.xlane.f32.xlu0 %v621
        %v623 = vpop.xlane.xlu0 %622
        %v624 = vrot.slane %v623, 4
        %v625 = vadd.f32 %v623, %v624
        %v626 = vrot.slane %v625, 2
        %v627 = vadd.f32 %v625, %v626
        %v628 = vrot.slane %v627, 1
        %v629 = vadd.f32 %v627, %v628
        %v630 = vmul.f32 %v553, %v549
        %v631 = vmul.f32 %v554, %v550
        %v632 = vmul.f32 %v555, %v551
        %v633 = vmul.f32 %v556, %v552
        %v634 = vsel %vm565, %v630, 0.0
        %v635 = vsel %vm565, %v631, 0.0
        %v636 = vadd.f32 %v634, %v635
        %v637 = vsel %vm565, %v632, 0.0
        %v638 = vadd.f32 %v636, %v637
        %v639 = vsel %vm565, %v633, 0.0
        %v640 = vadd.f32 %v638, %v639
        %641 = vadd.xlane.f32.xlu0 %v640
        %v642 = vpop.xlane.xlu0 %641
        %v643 = vrot.slane %v642, 4
        %v644 = vadd.f32 %v642, %v643
        %v645 = vrot.slane %v644, 2
        %v646 = vadd.f32 %v644, %v645
        %v647 = vrot.slane %v646, 1
        %v648 = vadd.f32 %v646, %v647
        %vm649 = vcmask 0
        %650 = vst.msk [vmem:[%s520] sm:$0x1] %vm649, %v610
        %v651 = vmul.f32 %v580, %v610
        %v652 = vmul.f32 %v595, %v595
        %v653 = vsub.f32 %v651, %v652
        %vm654 = vcmp.ne.f32.partialorder %v653, 0.0
        %v655 = vsel %vm654, %v653, 1.0
        %v656 = vmul.f32 %v610, %v629
        %v657 = vmul.f32 %v595, %v648
        %v658 = vsub.f32 %v656, %v657
        %v659 = vrcp.pop %v655
        %v660 = vmul.f32 %v658, %v659
        %v661 = vsel %vm654, %v660, 0.0
        %v662 = vsub.f32 0.0, %v595
        %v663 = vmul.f32 %v662, %v629
        %v664 = vmul.f32 %v580, %v648
        %v665 = vadd.f32 %v663, %v664
        %v666 = vmul.f32 %v665, %v659
        %v667 = vsel %vm654, %v666, 0.0
        %v668 = vmul.f32 %v661, %v545
        %v669 = vmul.f32 %v661, %v546
        %v670 = vmul.f32 %v661, %v547
        %v671 = vmul.f32 %v661, %v548
        %v672 = vadd.f32 %v668, %v667
        %v673 = vadd.f32 %v669, %v667
        %v674 = vadd.f32 %v670, %v667
        %v675 = vadd.f32 %v671, %v667
        %v676 = vsub.f32 %v672, %v549
        %v677 = vsub.f32 %v673, %v550
        %v678 = vsub.f32 %v674, %v551
        %v679 = vsub.f32 %v675, %v552
        %v680 = vmul.f32 %v553, %v676
        %v681 = vmul.f32 %v554, %v677
        %v682 = vmul.f32 %v555, %v678
        %v683 = vmul.f32 %v556, %v679
        %v684 = vmul.f32 %v680, %v676
        %v685 = vmul.f32 %v681, %v677
        %v686 = vmul.f32 %v682, %v678
        %v687 = vmul.f32 %v683, %v679
        %v688 = vsel %vm565, %v684, 0.0
        %v689 = vsel %vm565, %v685, 0.0
        %v690 = vadd.f32 %v688, %v689
        %v691 = vsel %vm565, %v686, 0.0
        %v692 = vadd.f32 %v690, %v691
        %v693 = vsel %vm565, %v687, 0.0
        %v694 = vadd.f32 %v692, %v693
        %695 = vadd.xlane.f32.xlu0 %v694
        %v696 = vpop.xlane.xlu0 %695
        %v697 = vrot.slane %v696, 4
        %v698 = vadd.f32 %v696, %v697
        %v699 = vrot.slane %v698, 2
        %v700 = vadd.f32 %v698, %v699
        %v701 = vrot.slane %v700, 1
        %v702 = vadd.f32 %v700, %v701
        %703 = vst.msk [vmem:[%s523] sm:$0x1] %vm649, %v702
        %708 = vrot.lane.b32.xlu0 %v680, 1
        %v709 = vpop.permute.xlu0 %708
        %710 = vrot.lane.b32.xlu0 %v681, 1
        %v711 = vpop.permute.xlu0 %710
        %712 = vrot.lane.b32.xlu0 %v682, 1
        %v713 = vpop.permute.xlu0 %712
        %714 = vrot.lane.b32.xlu0 %v683, 1
        %v715 = vpop.permute.xlu0 %714
        %v720 = vsub.f32 %v680, %v709
        %v721 = vsub.f32 %v681, %v711
        %v722 = vsub.f32 %v682, %v713
        %v723 = vsub.f32 %v683, %v715
        %v724 = vand.u32 2147483647, %v720
        %v725 = vand.u32 2147483647, %v721
        %v726 = vand.u32 2147483647, %v722
        %v727 = vand.u32 2147483647, %v723
        %732 = vrot.lane.b32.xlu0 %v553, 1
        %v733 = vpop.permute.xlu0 %732
        %734 = vrot.lane.b32.xlu0 %v554, 1
        %v735 = vpop.permute.xlu0 %734
        %736 = vrot.lane.b32.xlu0 %v555, 1
        %v737 = vpop.permute.xlu0 %736
        %738 = vrot.lane.b32.xlu0 %v556, 1
        %v739 = vpop.permute.xlu0 %738
        %v744 = vmul.f32 %v553, %v733
        %v745 = vmul.f32 %v554, %v735
        %v746 = vmul.f32 %v555, %v737
        %v747 = vmul.f32 %v556, %v739
        %v748 = vmul.f32 %v724, %v744
        %v749 = vmul.f32 %v725, %v745
        %v750 = vmul.f32 %v726, %v746
        %v751 = vmul.f32 %v727, %v747
        %756 = vrot.lane.b32.xlu0 %v748, 127
        %v757 = vpop.permute.xlu0 %756
        %758 = vrot.lane.b32.xlu0 %v749, 127
        %v759 = vpop.permute.xlu0 %758
        %760 = vrot.lane.b32.xlu0 %v750, 127
        %v761 = vpop.permute.xlu0 %760
        %762 = vrot.lane.b32.xlu0 %v751, 127
        %v763 = vpop.permute.xlu0 %762
        %vm768 = vcmask 252928
        %v769 = vsel %vm768, %v757, 0.0
        %v770 = vsel %vm768, %v759, 0.0
        %v771 = vadd.f32 %v769, %v770
        %v772 = vsel %vm768, %v761, 0.0
        %v773 = vadd.f32 %v771, %v772
        %v774 = vsel %vm768, %v763, 0.0
        %v775 = vadd.f32 %v773, %v774
        %776 = vadd.xlane.f32.xlu0 %v775
        %v777 = vpop.xlane.xlu0 %776
        %v778 = vrot.slane %v777, 4
        %v779 = vadd.f32 %v777, %v778
        %v780 = vrot.slane %v779, 2
        %v781 = vadd.f32 %v779, %v780
        %v782 = vrot.slane %v781, 1
        %v783 = vadd.f32 %v781, %v782
        %v784 = vadd.f32 %v783, 0.0
        %vm785 = vcmask 1040384
        %v786 = vrot.slane %v680, 7
        %v787 = vrot.slane %v681, 7
        %v788 = vsel %vm785, %v786, %v787
        %v789 = vrot.slane %v682, 7
        %v790 = vsel %vm785, %v787, %v789
        %v791 = vrot.slane %v683, 7
        %v792 = vsel %vm785, %v789, %v791
        %v797 = vsub.f32 %v680, %v786
        %v798 = vsub.f32 %v681, %v788
        %v799 = vsub.f32 %v682, %v790
        %v800 = vsub.f32 %v683, %v792
        %v801 = vand.u32 2147483647, %v797
        %v802 = vand.u32 2147483647, %v798
        %v803 = vand.u32 2147483647, %v799
        %v804 = vand.u32 2147483647, %v800
        %v805 = vrot.slane %v553, 7
        %v806 = vrot.slane %v554, 7
        %v807 = vsel %vm785, %v805, %v806
        %v808 = vrot.slane %v555, 7
        %v809 = vsel %vm785, %v806, %v808
        %v810 = vrot.slane %v556, 7
        %v811 = vsel %vm785, %v808, %v810
        %v816 = vmul.f32 %v553, %v805
        %v817 = vmul.f32 %v554, %v807
        %v818 = vmul.f32 %v555, %v809
        %v819 = vmul.f32 %v556, %v811
        %v820 = vmul.f32 %v801, %v816
        %v821 = vmul.f32 %v802, %v817
        %v822 = vmul.f32 %v803, %v818
        %v823 = vmul.f32 %v804, %v819
        %vm828 = vcmask 1046528
        %v829 = vrot.slane %v820, 1
        %v830 = vrot.slane %v821, 1
        %v831 = vsel %vm828, %v829, %v830
        %v832 = vrot.slane %v822, 1
        %v833 = vsel %vm828, %v830, %v832
        %v834 = vrot.slane %v823, 1
        %v835 = vsel %vm828, %v832, %v834
        %v840 = vsel %vm565, %v831, 0.0
        %v841 = vsel %vm565, %v833, 0.0
        %v842 = vadd.f32 %v840, %v841
        %v843 = vsel %vm565, %v835, 0.0
        %v844 = vadd.f32 %v842, %v843
        %vm845 = vcmask 260096
        %v846 = vsel %vm845, %v834, 0.0
        %v847 = vadd.f32 %v844, %v846
        %848 = vadd.xlane.f32.xlu0 %v847
        %v849 = vpop.xlane.xlu0 %848
        %v850 = vrot.slane %v849, 4
        %v851 = vadd.f32 %v849, %v850
        %v852 = vrot.slane %v851, 2
        %v853 = vadd.f32 %v851, %v852
        %v854 = vrot.slane %v853, 1
        %v855 = vadd.f32 %v853, %v854
        %v856 = vadd.f32 %v784, %v855
        %857 = vst.msk [vmem:[%s526] sm:$0x1] %vm649, %v856
        %v858 = vlaneseq
        %v859 = vand.u32 %v858, 127
        %v860 = vld [vmem:[%s429] ss:$2 sm:$0xff]
        %s861 = scalar_lea.vmem %s429, 16 [#allocation2]
        %v862 = vld [vmem:[%s861] ss:$2 sm:$0xff]
        %v863 = vld [vmem:[%s438] ss:$2 sm:$0xff]
        %s864 = scalar_lea.vmem %s438, 16 [#allocation4]
        %v865 = vld [vmem:[%s864] ss:$2 sm:$0xff]
        %v866 = vld [vmem:[%s447] ss:$2 sm:$0xff]
        %s867 = scalar_lea.vmem %s447, 16 [#allocation6]
        %v868 = vld [vmem:[%s867] ss:$2 sm:$0xff]
        %v869 = vmul.f32 %v661, %v860
        %v870 = vmul.f32 %v661, %v862
        %v871 = vadd.f32 %v869, %v667
        %v872 = vadd.f32 %v870, %v667
        %v873 = vsub.f32 %v871, %v863
        %v874 = vsub.f32 %v872, %v865
        %v875 = vmul.f32 %v866, %v873
        %v876 = vmul.f32 %v868, %v874
        %v877 = vand.u32 %v859, 1
        %vm878 = vcmp.eq.s32.totalorder %v877, 0
        %v879 = vsel %vm878, 1, 0
        %vm880 = vcmp.eq.s32.totalorder %v879, 1
        %v881 = vsel %vm880, %v866, 0.0
        %v882 = vsel %vm880, %v868, 0.0
        %v883 = vsel %vm565, %v881, 0.0
        %v884 = vsel %vm565, %v882, 0.0
        %v885 = vadd.f32 %v883, %v884
        %886 = vadd.xlane.f32.xlu0 %v885
        %v887 = vpop.xlane.xlu0 %886
        %v888 = vrot.slane %v887, 4
        %v889 = vadd.f32 %v887, %v888
        %v890 = vrot.slane %v889, 2
        %v891 = vadd.f32 %v889, %v890
        %v892 = vrot.slane %v891, 1
        %v893 = vadd.f32 %v891, %v892
        %894 = vst.msk [vmem:[%s538] sm:$0x1] %vm649, %v893
        %897 = vrot.lane.b32.xlu0 %v875, 2
        %v898 = vpop.permute.xlu0 %897
        %899 = vrot.lane.b32.xlu0 %v876, 2
        %v900 = vpop.permute.xlu0 %899
        %v903 = vsub.f32 %v875, %v898
        %v904 = vsub.f32 %v876, %v900
        %v905 = vand.u32 2147483647, %v903
        %v906 = vand.u32 2147483647, %v904
        %909 = vrot.lane.b32.xlu0 %v866, 2
        %v910 = vpop.permute.xlu0 %909
        %911 = vrot.lane.b32.xlu0 %v868, 2
        %v912 = vpop.permute.xlu0 %911
        %v915 = vmul.f32 %v866, %v910
        %v916 = vmul.f32 %v868, %v912
        %v917 = vmul.f32 %v905, %v915
        %v918 = vmul.f32 %v906, %v916
        %921 = vrot.lane.b32.xlu0 %v917, 126
        %v922 = vpop.permute.xlu0 %921
        %923 = vrot.lane.b32.xlu0 %v918, 126
        %v924 = vpop.permute.xlu0 %923
        %v927 = vsel %vm880, %v922, 0.0
        %v928 = vsel %vm880, %v924, 0.0
        %vm929 = vcmask 244736
        %v930 = vsel %vm929, %v927, 0.0
        %v931 = vsel %vm929, %v928, 0.0
        %v932 = vadd.f32 %v930, %v931
        %933 = vadd.xlane.f32.xlu0 %v932
        %v934 = vpop.xlane.xlu0 %933
        %v935 = vrot.slane %v934, 4
        %v936 = vadd.f32 %v934, %v935
        %v937 = vrot.slane %v936, 2
        %v938 = vadd.f32 %v936, %v937
        %v939 = vrot.slane %v938, 1
        %v940 = vadd.f32 %v938, %v939
        %v941 = vadd.f32 %v940, 0.0
        %v942 = vrot.slane %v875, 7
        %v943 = vrot.slane %v876, 7
        %v944 = vsel %vm785, %v942, %v943
        %v947 = vsub.f32 %v875, %v942
        %v948 = vsub.f32 %v876, %v944
        %v949 = vand.u32 2147483647, %v947
        %v950 = vand.u32 2147483647, %v948
        %v951 = vrot.slane %v866, 7
        %v952 = vrot.slane %v868, 7
        %v953 = vsel %vm785, %v951, %v952
        %v956 = vmul.f32 %v866, %v951
        %v957 = vmul.f32 %v868, %v953
        %v958 = vmul.f32 %v949, %v956
        %v959 = vmul.f32 %v950, %v957
        %v960 = vsel %vm880, %v958, 0.0
        %v961 = vsel %vm880, %v959, 0.0
        %v964 = vrot.slane %v960, 1
        %v965 = vrot.slane %v961, 1
        %v966 = vsel %vm828, %v964, %v965
        %v969 = vsel %vm565, %v966, 0.0
        %v970 = vsel %vm845, %v965, 0.0
        %v971 = vadd.f32 %v969, %v970
        %972 = vadd.xlane.f32.xlu0 %v971
        %v973 = vpop.xlane.xlu0 %972
        %v974 = vrot.slane %v973, 4
        %v975 = vadd.f32 %v973, %v974
        %v976 = vrot.slane %v975, 2
        %v977 = vadd.f32 %v975, %v976
        %v978 = vrot.slane %v977, 1
        %v979 = vadd.f32 %v977, %v978
        %v980 = vadd.f32 %v941, %v979
        %981 = vst.msk [vmem:[%s529] sm:$0x1] %vm649, %v980
        %v982 = vld [vmem:[%s429] ss:$4 sm:$0xff]
        %v983 = vld [vmem:[%s438] ss:$4 sm:$0xff]
        %v984 = vld [vmem:[%s447] ss:$4 sm:$0xff]
        %v985 = vmul.f32 %v661, %v982
        %v986 = vadd.f32 %v985, %v667
        %v987 = vsub.f32 %v986, %v983
        %v988 = vmul.f32 %v984, %v987
        %v989 = vand.u32 %v859, 3
        %vm990 = vcmp.eq.s32.totalorder %v989, 0
        %v991 = vsel %vm990, 1, 0
        %vm992 = vcmp.eq.s32.totalorder %v991, 1
        %v993 = vsel %vm992, %v984, 0.0
        %v994 = vsel %vm565, %v993, 0.0
        %995 = vadd.xlane.f32.xlu0 %v994
        %v996 = vpop.xlane.xlu0 %995
        %v997 = vrot.slane %v996, 4
        %v998 = vadd.f32 %v996, %v997
        %v999 = vrot.slane %v998, 2
        %v1000 = vadd.f32 %v998, %v999
        %v1001 = vrot.slane %v1000, 1
        %v1002 = vadd.f32 %v1000, %v1001
        %1003 = vst.msk [vmem:[%s541] sm:$0x1] %vm649, %v1002
        %1005 = vrot.lane.b32.xlu0 %v988, 4
        %v1006 = vpop.permute.xlu0 %1005
        %v1008 = vsub.f32 %v988, %v1006
        %v1009 = vand.u32 2147483647, %v1008
        %1011 = vrot.lane.b32.xlu0 %v984, 4
        %v1012 = vpop.permute.xlu0 %1011
        %v1014 = vmul.f32 %v984, %v1012
        %v1015 = vmul.f32 %v1009, %v1014
        %1017 = vrot.lane.b32.xlu0 %v1015, 124
        %v1018 = vpop.permute.xlu0 %1017
        %v1020 = vsel %vm992, %v1018, 0.0
        %vm1021 = vcmask 228352
        %v1022 = vsel %vm1021, %v1020, 0.0
        %1023 = vadd.xlane.f32.xlu0 %v1022
        %v1024 = vpop.xlane.xlu0 %1023
        %v1025 = vrot.slane %v1024, 4
        %v1026 = vadd.f32 %v1024, %v1025
        %v1027 = vrot.slane %v1026, 2
        %v1028 = vadd.f32 %v1026, %v1027
        %v1029 = vrot.slane %v1028, 1
        %v1030 = vadd.f32 %v1028, %v1029
        %v1031 = vadd.f32 %v1030, 0.0
        %v1032 = vrot.slane %v988, 7
        %v1034 = vsub.f32 %v988, %v1032
        %v1035 = vand.u32 2147483647, %v1034
        %v1036 = vrot.slane %v984, 7
        %v1038 = vmul.f32 %v984, %v1036
        %v1039 = vmul.f32 %v1035, %v1038
        %v1040 = vsel %vm992, %v1039, 0.0
        %v1042 = vrot.slane %v1040, 1
        %v1044 = vsel %vm845, %v1042, 0.0
        %1045 = vadd.xlane.f32.xlu0 %v1044
        %v1046 = vpop.xlane.xlu0 %1045
        %v1047 = vrot.slane %v1046, 4
        %v1048 = vadd.f32 %v1046, %v1047
        %v1049 = vrot.slane %v1048, 2
        %v1050 = vadd.f32 %v1048, %v1049
        %v1051 = vrot.slane %v1050, 1
        %v1052 = vadd.f32 %v1050, %v1051
        %v1053 = vadd.f32 %v1031, %v1052
        %1054 = vst.msk [vmem:[%s532] sm:$0x1] %vm649, %v1053
        %v1055 = vld [vmem:[%s429] ss:$8 sm:$0xf]
        %v1056 = vld [vmem:[%s438] ss:$8 sm:$0xf]
        %v1057 = vld [vmem:[%s447] ss:$8 sm:$0xf]
        %v1058 = vmul.f32 %v661, %v1055
        %v1059 = vadd.f32 %v1058, %v667
        %v1060 = vsub.f32 %v1059, %v1056
        %v1061 = vmul.f32 %v1057, %v1060
        %v1062 = vand.u32 %v859, 7
        %vm1063 = vcmp.eq.s32.totalorder %v1062, 0
        %v1064 = vsel %vm1063, 1, 0
        %vm1065 = vcmp.eq.s32.totalorder %v1064, 1
        %v1066 = vsel %vm1065, %v1057, 0.0
        %vm1067 = vcmask 257024
        %v1068 = vsel %vm1067, %v1066, 0.0
        %1069 = vadd.xlane.f32.xlu0 %v1068
        %v1070 = vpop.xlane.xlu0 %1069
        %v1071 = vrot.slane %v1070, 4
        %v1072 = vadd.f32 %v1070, %v1071
        %v1073 = vrot.slane %v1072, 2
        %v1074 = vadd.f32 %v1072, %v1073
        %v1075 = vrot.slane %v1074, 1
        %v1076 = vadd.f32 %v1074, %v1075
        %1077 = vst.msk [vmem:[%s544] sm:$0x1] %vm649, %v1076
        %1079 = vrot.lane.b32.xlu0 %v1061, 8
        %v1080 = vpop.permute.xlu0 %1079
        %v1082 = vsub.f32 %v1061, %v1080
        %v1083 = vand.u32 2147483647, %v1082
        %1085 = vrot.lane.b32.xlu0 %v1057, 8
        %v1086 = vpop.permute.xlu0 %1085
        %v1088 = vmul.f32 %v1057, %v1086
        %v1089 = vmul.f32 %v1083, %v1088
        %1091 = vrot.lane.b32.xlu0 %v1089, 120
        %v1092 = vpop.permute.xlu0 %1091
        %v1094 = vsel %vm1065, %v1092, 0.0
        %vm1095 = vcmask 191488
        %v1096 = vsel %vm1095, %v1094, 0.0
        %1097 = vadd.xlane.f32.xlu0 %v1096
        %v1098 = vpop.xlane.xlu0 %1097
        %v1099 = vrot.slane %v1098, 4
        %v1100 = vadd.f32 %v1098, %v1099
        %v1101 = vrot.slane %v1100, 2
        %v1102 = vadd.f32 %v1100, %v1101
        %v1103 = vrot.slane %v1102, 1
        %v1104 = vadd.f32 %v1102, %v1103
        %v1105 = vadd.f32 %v1104, 0.0
        %v1106 = vrot.slane %v1061, 7
        %v1108 = vsub.f32 %v1061, %v1106
        %v1109 = vand.u32 2147483647, %v1108
        %v1110 = vrot.slane %v1057, 7
        %v1112 = vmul.f32 %v1057, %v1110
        %v1113 = vmul.f32 %v1109, %v1112
        %v1114 = vsel %vm1065, %v1113, 0.0
        %v1116 = vrot.slane %v1114, 1
        %vm1118 = vcmask 256000
        %v1119 = vsel %vm1118, %v1116, 0.0
        %1120 = vadd.xlane.f32.xlu0 %v1119
        %v1121 = vpop.xlane.xlu0 %1120
        %v1122 = vrot.slane %v1121, 4
        %v1123 = vadd.f32 %v1121, %v1122
        %v1124 = vrot.slane %v1123, 2
        %v1125 = vadd.f32 %v1123, %v1124
        %v1126 = vrot.slane %v1125, 1
        %v1127 = vadd.f32 %v1125, %v1126
        %v1128 = vadd.f32 %v1105, %v1127
        %1129 = vst.msk [vmem:[%s535] sm:$0x1] %vm649, %v1128
        %p1130 = scmp.lt.s32.totalorder %s29, 1
        %s1131 = scalar_select %p1130, %s29, 1
        %s1132 = scalar_lea.vmem %s3, %s1131
        %p1133 = scmp.lt.s32.totalorder %s29, 1
        %s1134 = scalar_select %p1133, %s29, 1
        %s1135 = scalar_lea.vmem %s4, %s1134
        %p1136 = scmp.lt.s32.totalorder %s29, 1
        %s1137 = scalar_select %p1136, %s29, 1
        %s1138 = scalar_lea.vmem %s5, %s1137
        %p1139 = scmp.lt.s32.totalorder %s29, 1
        %s1140 = scalar_select %p1139, %s29, 1
        %s1141 = scalar_lea.vmem %s6, %s1140
        %p1142 = scmp.lt.s32.totalorder %s29, 1
        %s1143 = scalar_select %p1142, %s29, 1
        %s1144 = scalar_lea.vmem %s7, %s1143
        %p1145 = scmp.lt.s32.totalorder %s29, 1
        %s1146 = scalar_select %p1145, %s29, 1
        %s1147 = scalar_lea.vmem %s8, %s1146
        %p1148 = scmp.lt.s32.totalorder %s29, 1
        %s1149 = scalar_select %p1148, %s29, 1
        %s1150 = scalar_lea.vmem %s9, %s1149
        %p1151 = scmp.lt.s32.totalorder %s29, 1
        %s1152 = scalar_select %p1151, %s29, 1
        %s1153 = scalar_lea.vmem %s10, %s1152
        %p1154 = scmp.lt.s32.totalorder %s29, 1
        %s1155 = scalar_select %p1154, %s29, 1
        %s1156 = scalar_lea.vmem %s11, %s1155
        // Predicated region
        $region45: #{tpu_custom_call.1} parent=31 // pred_check
          %p1157 = pneg %p125
        $region46: #{tpu_custom_call.1} parent=31 // pred_check_branch
          %1159 = sbr.rel (%p1157) target = $region48
        $region47: #{tpu_custom_call.1} parent=31 // pred_region
          _
        $region48: #{tpu_custom_call.1} parent=31 // pred_fallthru
          _
        // Predicated region
        $region49: #{tpu_custom_call.1} parent=31 // pred_check
          %p1160 = pneg %p151
        $region50: #{tpu_custom_call.1} parent=31 // pred_check_branch
          %1162 = sbr.rel (%p1160) target = $region52
        $region51: #{tpu_custom_call.1} parent=31 // pred_region
          _
        $region52: #{tpu_custom_call.1} parent=31 // pred_fallthru
          _
        // Predicated region
        $region53: #{tpu_custom_call.1} parent=31 // pred_check
          %p1163 = pneg %p177
        $region54: #{tpu_custom_call.1} parent=31 // pred_check_branch
          %1165 = sbr.rel (%p1163) target = $region56
        $region55: #{tpu_custom_call.1} parent=31 // pred_region
          _
        $region56: #{tpu_custom_call.1} parent=31 // pred_fallthru
          _
        // Predicated region
        $region57: #{tpu_custom_call.1} parent=31 // pred_check
          %p1166 = pneg %p203
        $region58: #{tpu_custom_call.1} parent=31 // pred_check_branch
          %1168 = sbr.rel (%p1166) target = $region60
        $region59: #{tpu_custom_call.1} parent=31 // pred_region
          _
        $region60: #{tpu_custom_call.1} parent=31 // pred_fallthru
          _
        // Predicated region
        $region61: #{tpu_custom_call.1} parent=31 // pred_check
          %p1169 = pneg %p229
        $region62: #{tpu_custom_call.1} parent=31 // pred_check_branch
          %1171 = sbr.rel (%p1169) target = $region64
        $region63: #{tpu_custom_call.1} parent=31 // pred_region
          _
        $region64: #{tpu_custom_call.1} parent=31 // pred_fallthru
          _
        // Predicated region
        $region65: #{tpu_custom_call.1} parent=31 // pred_check
          %p1172 = pneg %p255
        $region66: #{tpu_custom_call.1} parent=31 // pred_check_branch
          %1174 = sbr.rel (%p1172) target = $region68
        $region67: #{tpu_custom_call.1} parent=31 // pred_region
          _
        $region68: #{tpu_custom_call.1} parent=31 // pred_fallthru
          _
        // Predicated region
        $region69: #{tpu_custom_call.1} parent=31 // pred_check
          %p1175 = pneg %p281
        $region70: #{tpu_custom_call.1} parent=31 // pred_check_branch
          %1177 = sbr.rel (%p1175) target = $region72
        $region71: #{tpu_custom_call.1} parent=31 // pred_region
          _
        $region72: #{tpu_custom_call.1} parent=31 // pred_fallthru
          _
        // Predicated region
        $region73: #{tpu_custom_call.1} parent=31 // pred_check
          %p1178 = pneg %p307
        $region74: #{tpu_custom_call.1} parent=31 // pred_check_branch
          %1180 = sbr.rel (%p1178) target = $region76
        $region75: #{tpu_custom_call.1} parent=31 // pred_region
          _
        $region76: #{tpu_custom_call.1} parent=31 // pred_fallthru
          _
        // Predicated region
        $region77: #{tpu_custom_call.1} parent=31 // pred_check
          %p1181 = pneg %p333
        $region78: #{tpu_custom_call.1} parent=31 // pred_check_branch
          %1183 = sbr.rel (%p1181) target = $region80
        $region79: #{tpu_custom_call.1} parent=31 // pred_region
          _
        $region80: #{tpu_custom_call.1} parent=31 // pred_fallthru
          _
      $region32: #{tpu_custom_call.1} parent=5 // pred_fallthru
        _
      %p1184 = scmp.le.s32.totalorder 2, %s24
      // Predicated region
      $region81: #{tpu_custom_call.1} parent=5 // pred_check
        %p1185 = pneg %p1184
      $region82: #{tpu_custom_call.1} parent=5 // pred_check_branch
        %1187 = sbr.rel (%p1185) target = $region84
      $region83: #{tpu_custom_call.1} parent=5 // pred_region
        %s1188 = ssub.s32 %s24, 2
        // Predicated region
        $region85: #{tpu_custom_call.1} parent=83 // pred_check
          %p1189 = pneg %p131
        $region86: #{tpu_custom_call.1} parent=83 // pred_check_branch
          %1191 = sbr.rel (%p1189) target = $region88
        $region87: #{tpu_custom_call.1} parent=83 // pred_region
          %p1192 = scmp.lt.s32.totalorder %s30, 1
          %s1193 = scalar_select %p1192, %s30, 1
          %s1194 = scalar_lea.vmem %s3, %s1193
        $region88: #{tpu_custom_call.1} parent=83 // pred_fallthru
          _
        // Predicated region
        $region89: #{tpu_custom_call.1} parent=83 // pred_check
          %p1195 = pneg %p157
        $region90: #{tpu_custom_call.1} parent=83 // pred_check_branch
          %1197 = sbr.rel (%p1195) target = $region92
        $region91: #{tpu_custom_call.1} parent=83 // pred_region
          %p1198 = scmp.lt.s32.totalorder %s30, 1
          %s1199 = scalar_select %p1198, %s30, 1
          %s1200 = scalar_lea.vmem %s4, %s1199
        $region92: #{tpu_custom_call.1} parent=83 // pred_fallthru
          _
        // Predicated region
        $region93: #{tpu_custom_call.1} parent=83 // pred_check
          %p1201 = pneg %p183
        $region94: #{tpu_custom_call.1} parent=83 // pred_check_branch
          %1203 = sbr.rel (%p1201) target = $region96
        $region95: #{tpu_custom_call.1} parent=83 // pred_region
          %p1204 = scmp.lt.s32.totalorder %s30, 1
          %s1205 = scalar_select %p1204, %s30, 1
          %s1206 = scalar_lea.vmem %s5, %s1205
        $region96: #{tpu_custom_call.1} parent=83 // pred_fallthru
          _
        // Predicated region
        $region97: #{tpu_custom_call.1} parent=83 // pred_check
          %p1207 = pneg %p209
        $region98: #{tpu_custom_call.1} parent=83 // pred_check_branch
          %1209 = sbr.rel (%p1207) target = $region100
        $region99: #{tpu_custom_call.1} parent=83 // pred_region
          %p1210 = scmp.lt.s32.totalorder %s30, 1
          %s1211 = scalar_select %p1210, %s30, 1
          %s1212 = scalar_lea.vmem %s6, %s1211
        $region100: #{tpu_custom_call.1} parent=83 // pred_fallthru
          _
        // Predicated region
        $region101: #{tpu_custom_call.1} parent=83 // pred_check
          %p1213 = pneg %p235
        $region102: #{tpu_custom_call.1} parent=83 // pred_check_branch
          %1215 = sbr.rel (%p1213) target = $region104
        $region103: #{tpu_custom_call.1} parent=83 // pred_region
          %p1216 = scmp.lt.s32.totalorder %s30, 1
          %s1217 = scalar_select %p1216, %s30, 1
          %s1218 = scalar_lea.vmem %s7, %s1217
        $region104: #{tpu_custom_call.1} parent=83 // pred_fallthru
          _
        // Predicated region
        $region105: #{tpu_custom_call.1} parent=83 // pred_check
          %p1219 = pneg %p261
        $region106: #{tpu_custom_call.1} parent=83 // pred_check_branch
          %1221 = sbr.rel (%p1219) target = $region108
        $region107: #{tpu_custom_call.1} parent=83 // pred_region
          %p1222 = scmp.lt.s32.totalorder %s30, 1
          %s1223 = scalar_select %p1222, %s30, 1
          %s1224 = scalar_lea.vmem %s8, %s1223
        $region108: #{tpu_custom_call.1} parent=83 // pred_fallthru
          _
        // Predicated region
        $region109: #{tpu_custom_call.1} parent=83 // pred_check
          %p1225 = pneg %p287
        $region110: #{tpu_custom_call.1} parent=83 // pred_check_branch
          %1227 = sbr.rel (%p1225) target = $region112
        $region111: #{tpu_custom_call.1} parent=83 // pred_region
          %p1228 = scmp.lt.s32.totalorder %s30, 1
          %s1229 = scalar_select %p1228, %s30, 1
          %s1230 = scalar_lea.vmem %s9, %s1229
        $region112: #{tpu_custom_call.1} parent=83 // pred_fallthru
          _
        // Predicated region
        $region113: #{tpu_custom_call.1} parent=83 // pred_check
          %p1231 = pneg %p313
        $region114: #{tpu_custom_call.1} parent=83 // pred_check_branch
          %1233 = sbr.rel (%p1231) target = $region116
        $region115: #{tpu_custom_call.1} parent=83 // pred_region
          %p1234 = scmp.lt.s32.totalorder %s30, 1
          %s1235 = scalar_select %p1234, %s30, 1
          %s1236 = scalar_lea.vmem %s10, %s1235
        $region116: #{tpu_custom_call.1} parent=83 // pred_fallthru
          _
        // Predicated region
        $region117: #{tpu_custom_call.1} parent=83 // pred_check
          %p1237 = pneg %p339
        $region118: #{tpu_custom_call.1} parent=83 // pred_check_branch
          %1239 = sbr.rel (%p1237) target = $region120
        $region119: #{tpu_custom_call.1} parent=83 // pred_region
          %p1240 = scmp.lt.s32.totalorder %s30, 1
          %s1241 = scalar_select %p1240, %s30, 1
          %s1242 = scalar_lea.vmem %s11, %s1241
        $region120: #{tpu_custom_call.1} parent=83 // pred_fallthru
          _
      $region84: #{tpu_custom_call.1} parent=5 // pred_fallthru
        _
    $region6: #{tpu_custom_call.1} parent=1 // loop_footer
      %s28 = sadd.s32 1, %s24
    $region7: #{tpu_custom_call.1} parent=1 // loop_footer_branch
      %23 = sbr.rel target = $region3
    $region8: #{tpu_custom_call.1} parent=1 // loop_exit
      _
    %1243 = vsyncpa [#allocation3], 1
    %s1244 = scalar_lea.sflag [#allocation3], 1
    %1245 = vsyncpa %s1244, 1
    %1246 = vsyncpa [#allocation5], 1
    %s1247 = scalar_lea.sflag [#allocation5], 1
    %1248 = vsyncpa %s1247, 1

</llo_original>
